<compile_context>
chip_gen: v7x
topology: tpu7x:2x2x1
jax: 0.10.0
libtpu: 0.0.40
codegen_flags: <defaults>
</compile_context>

<pallas_src>
import math

import jax
import jax.numpy as jnp
from jax.experimental import pallas as pl
from jax.experimental.pallas import tpu as pltpu

LANE = 128
SUBLANE = 8


def _round_up(x, m):
    return (x + m - 1) // m * m


def _pad2(a, rows, cols, dtype=jnp.float32):
    out = jnp.zeros((rows, cols), dtype)
    return out.at[: a.shape[0], : a.shape[1]].set(a.astype(dtype))


# --------------------------------------------------------------------------- #
# Kernel: one grid step == one AddGraph timestep (GCN -> HCA -> 1-step GRU).  #
# --------------------------------------------------------------------------- #
def _addgraph_kernel(adj_ref, x_ref, gcn_w_ref, gcn_b_ref, qt_ref, r_ref,
                     w_cs_ref, b_all_ref, b_hn_ref,
                     h_ref, c_ref):
    t = pl.program_id(0)
    w, n_sub, h_pad = c_ref.shape

    # Reset the temporal window at the first timestep (scratch persists across steps).
    @pl.when(t == 0)
    def _():
        c_ref[...] = jnp.zeros_like(c_ref)

    # ---------------- GCNConv: current = A_norm @ (x @ W) + b ------------------
    # bf16 MXU operands, f32 accumulation.
    xw = jnp.dot(x_ref[...], gcn_w_ref[...], preferred_element_type=jnp.float32)
    current = jnp.dot(adj_ref[...], xw.astype(jnp.bfloat16),
                      preferred_element_type=jnp.float32)
    current = current + gcn_b_ref[...]                      # (N, H) + (1, H), f32

    # ---------------- HCA: attention over the circular temporal window ---------
    c_flat = c_ref[...].reshape(w * n_sub, h_pad)           # layout-preserving merge
    m = jnp.tanh(jnp.dot(c_flat.astype(jnp.bfloat16), qt_ref[...],
                         preferred_element_type=jnp.float32))
    e_flat = jnp.sum(m * r_ref[...], axis=-1, keepdims=True)       # (w*N, 1)
    e = [e_flat[j * n_sub:(j + 1) * n_sub, :] for j in range(w)]   # w x (N, 1)

    e_max = e[0]
    for ej in e[1:]:
        e_max = jnp.maximum(e_max, ej)

    # Circular buffer: at step t the slots 0..t-1 hold h_0..h_{t-1} (for t < w) and
    # slot t is still zero.  Mask (slot <= t) therefore includes exactly one zero row
    # plus the t real rows for t < w, and all w real rows for t >= w -- identical to
    # torch's variable-length concatenation (softmax is order-invariant).
    p = []
    denom = None
    for j in range(w):
        pj = jnp.exp(e[j] - e_max) * (t >= j).astype(jnp.float32)
        p.append(pj)
        denom = pj if denom is None else denom + pj
    inv_denom = pl.reciprocal(denom, approx=True)            # EUP slot, VALU stays free

    short = (p[0] * inv_denom) * c_ref[0]
    for j in range(1, w):
        short = short + (p[j] * inv_denom) * c_ref[j]         # re-read scratch per slot

    # ---------------- GRU, one step with h0 = 0 --------------------------------
    # Single fused K = 2*H_pad MXU call for all three gates; W_hh is mathematically
    # unused (h0 == 0), only the hidden biases survive:
    #   n = tanh(g_n + r * b_hn),  h = (1 - z) * n.
    cs = jnp.concatenate([current, short], axis=-1).astype(jnp.bfloat16)   # (N, 2*H_pad)
    g = (jnp.dot(cs, w_cs_ref[...], preferred_element_type=jnp.float32)
         + b_all_ref[...])                                    # (N, 3*H_pad), f32
    r_gate = jax.nn.sigmoid(g[:, :h_pad])
    z_gate = jax.nn.sigmoid(g[:, h_pad:2 * h_pad])
    n_gate = jnp.tanh(g[:, 2 * h_pad:] + r_gate * b_hn_ref[...])
    h_t = (1.0 - z_gate) * n_gate

    h_ref[...] = h_t                                          # lane-dense store

    # Circular-buffer window update: overwrite the oldest slot (t % w).
    slot = t % w
    for j in range(w):
        @pl.when(slot == j)
        def _(j=j):
            c_ref[j] = h_t


# --------------------------------------------------------------------------- #
# Host-side parameter packing and the fused forward wrapper.                  #
# --------------------------------------------------------------------------- #
def init_params(key, input_dim, hidden_dim):
    """Raw parameters matching the torch module's shapes / init."""
    ks = jax.random.split(key, 6)
    stdv = 1.0 / math.sqrt(hidden_dim)
    glorot = math.sqrt(6.0 / (input_dim + hidden_dim))
    return dict(
        hidden_dim=hidden_dim,
        gcn_w=jax.random.uniform(ks[0], (input_dim, hidden_dim), jnp.float32, -glorot, glorot),
        gcn_b=jnp.zeros((hidden_dim,), jnp.float32),
        q=jax.random.uniform(ks[1], (hidden_dim, hidden_dim), jnp.float32, -stdv, stdv),
        r=jax.random.uniform(ks[2], (hidden_dim,), jnp.float32, -stdv, stdv),
        # GRU(2H -> H), gate order (r, z, n).  weight_hh is unused because h0 == 0.
        w_ih=jax.random.uniform(ks[3], (3 * hidden_dim, 2 * hidden_dim), jnp.float32, -stdv, stdv),
        b_ih=jax.random.uniform(ks[4], (3 * hidden_dim,), jnp.float32, -stdv, stdv),
        b_hh=jax.random.uniform(ks[5], (3 * hidden_dim,), jnp.float32, -stdv, stdv),
    )


def prepare_kernel_params(raw):
    """Pad / fuse / pre-transpose the raw params into MXU-friendly kernel tensors."""
    hd = raw["hidden_dim"]
    f_in = raw["gcn_w"].shape[0]
    h_pad = _round_up(hd, LANE)
    f_pad = _round_up(f_in, LANE)

    # Fuse the "current" and "short" input halves of the GRU into one (2H_pad, 3H_pad)
    # weight with 128-lane-aligned gate blocks -> a single K=2H_pad matmul per step.
    w_iht = raw["w_ih"].T                                  # [2H, 3H]
    w_cs = jnp.zeros((2 * h_pad, 3 * h_pad), jnp.float32)
    for k in range(3):                                     # gate order (r, z, n)
        w_cs = w_cs.at[:hd, k * h_pad:k * h_pad + hd].set(w_iht[:hd, k * hd:(k + 1) * hd])
        w_cs = w_cs.at[h_pad:h_pad + hd, k * h_pad:k * h_pad + hd].set(
            w_iht[hd:, k * hd:(k + 1) * hd])

    b_ih, b_hh = raw["b_ih"], raw["b_hh"]
    b_all = jnp.zeros((1, 3 * h_pad), jnp.float32)
    b_all = b_all.at[0, 0:hd].set(b_ih[:hd] + b_hh[:hd])                          # r gate
    b_all = b_all.at[0, h_pad:h_pad + hd].set(b_ih[hd:2 * hd] + b_hh[hd:2 * hd])  # z gate
    b_all = b_all.at[0, 2 * h_pad:2 * h_pad + hd].set(b_ih[2 * hd:])              # n gate (input bias)

    return dict(
        hidden_dim=hd, h_pad=h_pad, f_pad=f_pad,
        gcn_w=_pad2(raw["gcn_w"], f_pad, h_pad, jnp.bfloat16),
        gcn_b=_pad2(raw["gcn_b"][None, :], 1, h_pad),
        q_t=_pad2(raw["q"].T, h_pad, h_pad, jnp.bfloat16),   # pre-transposed on host
        r=_pad2(raw["r"][None, :], 1, h_pad),
        w_cs=w_cs.astype(jnp.bfloat16),
        b_all=b_all,
        b_hn=_pad2(b_hh[2 * hd:][None, :], 1, h_pad),
    )


def addgraph_forward(adjs, xs, raw_params, w=3):
    """Full temporal forward in a single pallas_call with grid=(T,).

    adjs: [T, N, N] dense symmetric-normalized adjacencies (GCN propagation matrices).
    xs:   [T, N, F_in] node features.  Returns [T, N, H] (float32).
    """
    kp = prepare_kernel_params(raw_params)
    t_total, n, f_in = xs.shape
    hd, h_pad, f_pad = kp["hidden_dim"], kp["h_pad"], kp["f_pad"]
    n_sub = _round_up(n, SUBLANE)                  # node axis: sublane-only padding

    # Single-pass pad + bf16 cast of the streamed tensors (no extra f32 padded copies).
    if n_sub == n:
        adjs_p = adjs.astype(jnp.bfloat16)
    else:
        adjs_p = jnp.zeros((t_total, n_sub, n_sub), jnp.bfloat16)
        adjs_p = adjs_p.at[:, :n, :n].set(adjs.astype(jnp.bfloat16))
    xs_p = jnp.zeros((t_total, n_sub, f_pad), jnp.bfloat16)
    xs_p = xs_p.at[:, :n, :f_in].set(xs.astype(jnp.bfloat16))

    def const_spec(a):                             # weights: VMEM-resident across all T
        nd = a.ndim
        return pl.BlockSpec(a.shape, lambda t, _nd=nd: (0,) * _nd)

    weights = (kp["gcn_w"], kp["gcn_b"], kp["q_t"], kp["r"],
               kp["w_cs"], kp["b_all"], kp["b_hn"])

    # Explicit VMEM budget: double-buffered streamed tiles + resident weights + window.
    stream_bytes = 2 * (n_sub * n_sub * 2 + n_sub * f_pad * 2 + n_sub * h_pad * 4)
    weight_bytes = sum(int(a.size) * a.dtype.itemsize for a in weights)
    scratch_bytes = w * n_sub * h_pad * 4
    vmem_limit = int(min(64 << 20,
                         max(16 << 20, 2 * (stream_bytes + weight_bytes + scratch_bytes))))

    grid_spec = pltpu.PrefetchScalarGridSpec(
        num_scalar_prefetch=0,
        grid=(t_total,),
        in_specs=[
            pl.BlockSpec((None, n_sub, n_sub), lambda t: (t, 0, 0)),   # adj[t] (bf16)
            pl.BlockSpec((None, n_sub, f_pad), lambda t: (t, 0, 0)),   # x[t]   (bf16)
        ] + [const_spec(a) for a in weights],
        out_specs=pl.BlockSpec((None, n_sub, h_pad), lambda t: (t, 0, 0)),
        scratch_shapes=[pltpu.VMEM((w, n_sub, h_pad), jnp.float32)],   # circular window
    )

    h_all = pl.pallas_call(
        _addgraph_kernel,
        out_shape=jax.ShapeDtypeStruct((t_total, n_sub, h_pad), jnp.float32),
        grid_spec=grid_spec,
        compiler_params=pltpu.CompilerParams(
            dimension_semantics=("arbitrary",),    # the timestep recurrence is sequential
            vmem_limit_bytes=vmem_limit),
    )(adjs_p, xs_p, *weights)

    return h_all[:, :n, :hd]


# --------------------------------------------------------------------------- #
# Pure-JAX reference (mirrors AddGraph.forward, dropout = 0) and test driver. #
# --------------------------------------------------------------------------- #
def addgraph_reference(adjs, xs, raw, w=3):
    t_total, n, _ = xs.shape
    hd = raw["hidden_dim"]
    q, r = raw["q"], raw["r"]
    w_ih, b_ih, b_hh = raw["w_ih"], raw["b_ih"], raw["b_hh"]
    h_list = []
    for t in range(t_total):
        cur = adjs[t] @ (xs[t] @ raw["gcn_w"]) + raw["gcn_b"]
        if t == 0:
            c = jnp.zeros((1, n, hd), jnp.float32)
        elif t < w:
            c = jnp.concatenate([jnp.zeros((1, n, hd), jnp.float32)] + h_list[:t], axis=0)
        else:
            c = jnp.concatenate(h_list[t - w:t], axis=0)
        m = jnp.einsum('wnh,ih->wni', c, q)
        e = jnp.einsum('i,wni->nw', r, jnp.tanh(m))
        a = jax.nn.softmax(e, axis=1)
        short = jnp.einsum('nw,wnh->nh', a, c)
        gi = jnp.concatenate([cur, short], axis=-1) @ w_ih.T + b_ih
        r_g = jax.nn.sigmoid(gi[:, :hd] + b_hh[:hd])
        z_g = jax.nn.sigmoid(gi[:, hd:2 * hd] + b_hh[hd:2 * hd])
        n_g = jnp.tanh(gi[:, 2 * hd:] + r_g * b_hh[2 * hd:])
        h_list.append(((1.0 - z_g) * n_g)[None, ...])
    return jnp.concatenate(h_list, axis=0)


def build_norm_adj(key, n, num_edges):
    """Dense GCN propagation matrix D^{-1/2}(A_sym + I)D^{-1/2} from random edges."""
    src = jax.random.randint(key, (num_edges,), 0, n)
    dst = jax.random.randint(jax.random.fold_in(key, 1), (num_edges,), 0, n)
    a = jnp.zeros((n, n), jnp.float32)
    a = a.at[dst, src].set(1.0)
    a = a.at[src, dst].set(1.0)                      # undirected
    a = a.at[jnp.arange(n), jnp.arange(n)].set(1.0)  # self-loops
    deg = jnp.sum(a, axis=1)
    d_inv_sqrt = 1.0 / jnp.sqrt(deg)
    return a * d_inv_sqrt[:, None] * d_inv_sqrt[None, :]


if __name__ == "__main__":
    input_dim, num_nodes, hidden_dim, w = 16, 16, 32, 3
    t_steps = 5

    key = jax.random.PRNGKey(0)
    k_param, k_x, k_e = jax.random.split(key, 3)

    raw = init_params(k_param, input_dim, hidden_dim)
    xs = jax.random.normal(k_x, (t_steps, num_nodes, input_dim), jnp.float32)
    adjs = jnp.stack([build_norm_adj(jax.random.fold_in(k_e, t), num_nodes, 24)
                      for t in range(t_steps)])

    out = jax.block_until_ready(addgraph_forward(adjs, xs, raw, w=w))   # [T, N, H]
    ref = addgraph_reference(adjs, xs, raw, w=w)                        # f32 reference

    assert out.shape == (t_steps, num_nodes, hidden_dim)
    assert bool(jnp.all(jnp.isfinite(out)))
    # Kernel uses bf16 MXU operands (f32 accumulation) + approx reciprocal; the f32
    # reference therefore differs at the bf16 rounding level (~1e-2), not 1e-5.
    max_err = float(jnp.max(jnp.abs(out - ref)))
    assert max_err < 5e-2, f"kernel/reference mismatch: {max_err}"
    print("KERNEL_OK")
</pallas_src>

<mosaic_0001>
module attributes {stable_mosaic.version = 11 : i64} {
  func.func @_addgraph_kernel(%arg0: i32, %arg1: memref<1x16x16xbf16, #tpu.memory_space<vmem>>, %arg2: memref<1x16x128xbf16, #tpu.memory_space<vmem>>, %arg3: memref<128x128xbf16, #tpu.memory_space<vmem>>, %arg4: memref<1x128xf32, #tpu.memory_space<vmem>>, %arg5: memref<128x128xbf16, #tpu.memory_space<vmem>>, %arg6: memref<1x128xf32, #tpu.memory_space<vmem>>, %arg7: memref<256x384xbf16, #tpu.memory_space<vmem>>, %arg8: memref<1x384xf32, #tpu.memory_space<vmem>>, %arg9: memref<1x128xf32, #tpu.memory_space<vmem>>, %arg10: memref<1x16x128xf32, #tpu.memory_space<vmem>>, %arg11: memref<3x16x128xf32, #tpu.memory_space<vmem>>) attributes {dimension_semantics = [#tpu.dimension_semantics<arbitrary>], iteration_bounds = array<i64: 5>, scalar_prefetch = 0 : i64, scratch_operands = 1 : i64, tpu.core_type = #tpu.core_type<tc>, window_params = [{transform_indices = @transform_0, window_bounds = array<i64: 1, 16, 16>}, {transform_indices = @transform_1, window_bounds = array<i64: 1, 16, 128>}, {pipeline_mode = #tpu.pipeline_mode<synchronous>, transform_indices = @transform_2, window_bounds = array<i64: 128, 128>}, {pipeline_mode = #tpu.pipeline_mode<synchronous>, transform_indices = @transform_3, window_bounds = array<i64: 1, 128>}, {pipeline_mode = #tpu.pipeline_mode<synchronous>, transform_indices = @transform_4, window_bounds = array<i64: 128, 128>}, {pipeline_mode = #tpu.pipeline_mode<synchronous>, transform_indices = @transform_5, window_bounds = array<i64: 1, 128>}, {pipeline_mode = #tpu.pipeline_mode<synchronous>, transform_indices = @transform_6, window_bounds = array<i64: 256, 384>}, {pipeline_mode = #tpu.pipeline_mode<synchronous>, transform_indices = @transform_7, window_bounds = array<i64: 1, 384>}, {pipeline_mode = #tpu.pipeline_mode<synchronous>, transform_indices = @transform_8, window_bounds = array<i64: 1, 128>}, {transform_indices = @transform_9, window_bounds = array<i64: 1, 16, 128>}]} {
    %c0_i32 = arith.constant 0 : i32
    %0 = arith.cmpi eq, %arg0, %c0_i32 : i32
    %1 = arith.extui %0 : i1 to i32
    %c0_i32_0 = arith.constant 0 : i32
    %2 = arith.cmpi ne, %1, %c0_i32_0 : i32
    scf.if %2 {
      %cst_52 = arith.constant 0.000000e+00 : f32
      %121 = vector.broadcast %cst_52 : f32 to vector<3x16x128xf32>
      %c0_53 = arith.constant 0 : index
      %c0_54 = arith.constant 0 : index
      %c0_55 = arith.constant 0 : index
      %122 = vector.load %arg11[%c0_53, %c0_54, %c0_55] : memref<3x16x128xf32, #tpu.memory_space<vmem>>, vector<3x16x128xf32>
      tpu.vector_store %arg11[%c0_53, %c0_54, %c0_55], %121 {strides = array<i32>} : memref<3x16x128xf32, #tpu.memory_space<vmem>>, vector<3x16x128xf32>,
    } else {
    }
    %c0 = arith.constant 0 : index
    %c0_1 = arith.constant 0 : index
    %c0_2 = arith.constant 0 : index
    %3 = vector.load %arg2[%c0, %c0_1, %c0_2] : memref<1x16x128xbf16, #tpu.memory_space<vmem>>, vector<1x16x128xbf16>
    %4 = vector.shape_cast %3 : vector<1x16x128xbf16> to vector<16x128xbf16>
    %c0_3 = arith.constant 0 : index
    %c0_4 = arith.constant 0 : index
    %5 = vector.load %arg3[%c0_3, %c0_4] : memref<128x128xbf16, #tpu.memory_space<vmem>>, vector<128x128xbf16>
    %cst = arith.constant dense<0.000000e+00> : vector<16x128xf32>
    %6 = tpu.matmul %4, %5, %cst {dimension_numbers = #tpu.dot_dimension_numbers<[1], [0], [0], [1], [0, 0, 1, 1], [], []>} : vector<16x128xbf16>, vector<128x128xbf16>, vector<16x128xf32> -> vector<16x128xf32>
    %c0_5 = arith.constant 0 : index
    %c0_6 = arith.constant 0 : index
    %c0_7 = arith.constant 0 : index
    %7 = vector.load %arg1[%c0_5, %c0_6, %c0_7] : memref<1x16x16xbf16, #tpu.memory_space<vmem>>, vector<1x16x16xbf16>
    %8 = vector.shape_cast %7 : vector<1x16x16xbf16> to vector<16x16xbf16>
    %9 = arith.truncf %6 : vector<16x128xf32> to vector<16x128xbf16>
    %cst_8 = arith.constant dense<0.000000e+00> : vector<16x128xf32>
    %10 = tpu.matmul %8, %9, %cst_8 {dimension_numbers = #tpu.dot_dimension_numbers<[1], [0], [0], [1], [0, 0, 1, 1], [], []>} : vector<16x16xbf16>, vector<16x128xbf16>, vector<16x128xf32> -> vector<16x128xf32>
    %c0_9 = arith.constant 0 : index
    %c0_10 = arith.constant 0 : index
    %11 = vector.load %arg4[%c0_9, %c0_10] : memref<1x128xf32, #tpu.memory_space<vmem>>, vector<1x128xf32>
    %12 = vector.broadcast %11 : vector<1x128xf32> to vector<16x128xf32>
    %13 = arith.addf %10, %12 : vector<16x128xf32>
    %c0_11 = arith.constant 0 : index
    %c0_12 = arith.constant 0 : index
    %c0_13 = arith.constant 0 : index
    %14 = vector.load %arg11[%c0_11, %c0_12, %c0_13] : memref<3x16x128xf32, #tpu.memory_space<vmem>>, vector<3x16x128xf32>
    %15 = vector.shape_cast %14 : vector<3x16x128xf32> to vector<48x128xf32>
    %16 = arith.truncf %15 : vector<48x128xf32> to vector<48x128xbf16>
    %c0_14 = arith.constant 0 : index
    %c0_15 = arith.constant 0 : index
    %17 = vector.load %arg5[%c0_14, %c0_15] : memref<128x128xbf16, #tpu.memory_space<vmem>>, vector<128x128xbf16>
    %cst_16 = arith.constant dense<0.000000e+00> : vector<48x128xf32>
    %18 = tpu.matmul %16, %17, %cst_16 {dimension_numbers = #tpu.dot_dimension_numbers<[1], [0], [0], [1], [0, 0, 1, 1], [], []>} : vector<48x128xbf16>, vector<128x128xbf16>, vector<48x128xf32> -> vector<48x128xf32>
    %19 = math.tanh %18 : vector<48x128xf32>
    %c0_17 = arith.constant 0 : index
    %c0_18 = arith.constant 0 : index
    %20 = vector.load %arg6[%c0_17, %c0_18] : memref<1x128xf32, #tpu.memory_space<vmem>>, vector<1x128xf32>
    %21 = vector.broadcast %20 : vector<1x128xf32> to vector<48x128xf32>
    %22 = arith.mulf %19, %21 : vector<48x128xf32>
    %cst_19 = arith.constant dense<0.000000e+00> : vector<48xf32>
    %23 = vector.multi_reduction <add>, %22, %cst_19 [1] : vector<48x128xf32> to vector<48xf32>
    %24 = vector.shape_cast %23 : vector<48xf32> to vector<48x1xf32>
    %25 = vector.extract_strided_slice %24 {offsets = [0, 0], sizes = [16, 1], strides = [1, 1]} : vector<48x1xf32> to vector<16x1xf32>
    %26 = vector.extract_strided_slice %24 {offsets = [16, 0], sizes = [16, 1], strides = [1, 1]} : vector<48x1xf32> to vector<16x1xf32>
    %27 = vector.extract_strided_slice %24 {offsets = [32, 0], sizes = [16, 1], strides = [1, 1]} : vector<48x1xf32> to vector<16x1xf32>
    %28 = arith.maximumf %25, %26 : vector<16x1xf32>
    %29 = arith.maximumf %28, %27 : vector<16x1xf32>
    %30 = arith.subf %25, %29 : vector<16x1xf32>
    %31 = math.exp %30 : vector<16x1xf32>
    %c0_i32_20 = arith.constant 0 : i32
    %32 = arith.cmpi sge, %arg0, %c0_i32_20 : i32
    %33 = arith.extui %32 : i1 to i32
    %34 = arith.sitofp %33 : i32 to f32
    %35 = vector.broadcast %34 : f32 to vector<16x1xf32>
    %36 = arith.mulf %31, %35 : vector<16x1xf32>
    %37 = arith.subf %26, %29 : vector<16x1xf32>
    %38 = math.exp %37 : vector<16x1xf32>
    %c1_i32 = arith.constant 1 : i32
    %39 = arith.cmpi sge, %arg0, %c1_i32 : i32
    %40 = arith.extui %39 : i1 to i32
    %41 = arith.sitofp %40 : i32 to f32
    %42 = vector.broadcast %41 : f32 to vector<16x1xf32>
    %43 = arith.mulf %38, %42 : vector<16x1xf32>
    %44 = arith.addf %36, %43 : vector<16x1xf32>
    %45 = arith.subf %27, %29 : vector<16x1xf32>
    %46 = math.exp %45 : vector<16x1xf32>
    %c2_i32 = arith.constant 2 : i32
    %47 = arith.cmpi sge, %arg0, %c2_i32 : i32
    %48 = arith.extui %47 : i1 to i32
    %49 = arith.sitofp %48 : i32 to f32
    %50 = vector.broadcast %49 : f32 to vector<16x1xf32>
    %51 = arith.mulf %46, %50 : vector<16x1xf32>
    %52 = arith.addf %44, %51 : vector<16x1xf32>
    %53 = tpu.reciprocal %52 {approx = true} : vector<16x1xf32> -> vector<16x1xf32>
    %54 = arith.mulf %36, %53 : vector<16x1xf32>
    %c0_21 = arith.constant 0 : index
    %c0_22 = arith.constant 0 : index
    %c0_23 = arith.constant 0 : index
    %55 = vector.load %arg11[%c0_21, %c0_22, %c0_23] : memref<3x16x128xf32, #tpu.memory_space<vmem>>, vector<1x16x128xf32>
    %56 = vector.shape_cast %55 : vector<1x16x128xf32> to vector<16x128xf32>
    %57 = vector.broadcast %54 : vector<16x1xf32> to vector<16x128xf32>
    %58 = arith.mulf %57, %56 : vector<16x128xf32>
    %59 = arith.mulf %43, %53 : vector<16x1xf32>
    %c1 = arith.constant 1 : index
    %c0_24 = arith.constant 0 : index
    %c0_25 = arith.constant 0 : index
    %60 = vector.load %arg11[%c1, %c0_24, %c0_25] : memref<3x16x128xf32, #tpu.memory_space<vmem>>, vector<1x16x128xf32>
    %61 = vector.shape_cast %60 : vector<1x16x128xf32> to vector<16x128xf32>
    %62 = vector.broadcast %59 : vector<16x1xf32> to vector<16x128xf32>
    %63 = arith.mulf %62, %61 : vector<16x128xf32>
    %64 = arith.addf %58, %63 : vector<16x128xf32>
    %65 = arith.mulf %51, %53 : vector<16x1xf32>
    %c2 = arith.constant 2 : index
    %c0_26 = arith.constant 0 : index
    %c0_27 = arith.constant 0 : index
    %66 = vector.load %arg11[%c2, %c0_26, %c0_27] : memref<3x16x128xf32, #tpu.memory_space<vmem>>, vector<1x16x128xf32>
    %67 = vector.shape_cast %66 : vector<1x16x128xf32> to vector<16x128xf32>
    %68 = vector.broadcast %65 : vector<16x1xf32> to vector<16x128xf32>
    %69 = arith.mulf %68, %67 : vector<16x128xf32>
    %70 = arith.addf %64, %69 : vector<16x128xf32>
    %71 = tpu.concatenate %13, %70 in 1 : vector<16x128xf32>, vector<16x128xf32> -> vector<16x256xf32>
    %72 = arith.truncf %71 : vector<16x256xf32> to vector<16x256xbf16>
    %c0_28 = arith.constant 0 : index
    %c0_29 = arith.constant 0 : index
    %73 = vector.load %arg7[%c0_28, %c0_29] : memref<256x384xbf16, #tpu.memory_space<vmem>>, vector<256x384xbf16>
    %cst_30 = arith.constant dense<0.000000e+00> : vector<16x384xf32>
    %74 = tpu.matmul %72, %73, %cst_30 {dimension_numbers = #tpu.dot_dimension_numbers<[1], [0], [0], [1], [0, 0, 1, 1], [], []>} : vector<16x256xbf16>, vector<256x384xbf16>, vector<16x384xf32> -> vector<16x384xf32>
    %c0_31 = arith.constant 0 : index
    %c0_32 = arith.constant 0 : index
    %75 = vector.load %arg8[%c0_31, %c0_32] : memref<1x384xf32, #tpu.memory_space<vmem>>, vector<1x384xf32>
    %76 = vector.broadcast %75 : vector<1x384xf32> to vector<16x384xf32>
    %77 = arith.addf %74, %76 : vector<16x384xf32>
    %78 = vector.extract_strided_slice %77 {offsets = [0, 0], sizes = [16, 128], strides = [1, 1]} : vector<16x384xf32> to vector<16x128xf32>
    %79 = arith.negf %78 : vector<16x128xf32>
    %80 = math.exp %79 : vector<16x128xf32>
    %cst_33 = arith.constant 1.000000e+00 : f32
    %81 = vector.broadcast %cst_33 : f32 to vector<16x128xf32>
    %82 = arith.addf %81, %80 : vector<16x128xf32>
    %83 = arith.divf %81, %82 : vector<16x128xf32>
    %84 = vector.extract_strided_slice %77 {offsets = [0, 128], sizes = [16, 128], strides = [1, 1]} : vector<16x384xf32> to vector<16x128xf32>
    %85 = arith.negf %84 : vector<16x128xf32>
    %86 = math.exp %85 : vector<16x128xf32>
    %cst_34 = arith.constant 1.000000e+00 : f32
    %87 = vector.broadcast %cst_34 : f32 to vector<16x128xf32>
    %88 = arith.addf %87, %86 : vector<16x128xf32>
    %89 = arith.divf %87, %88 : vector<16x128xf32>
    %90 = vector.extract_strided_slice %77 {offsets = [0, 256], sizes = [16, 128], strides = [1, 1]} : vector<16x384xf32> to vector<16x128xf32>
    %c0_35 = arith.constant 0 : index
    %c0_36 = arith.constant 0 : index
    %91 = vector.load %arg9[%c0_35, %c0_36] : memref<1x128xf32, #tpu.memory_space<vmem>>, vector<1x128xf32>
    %92 = vector.broadcast %91 : vector<1x128xf32> to vector<16x128xf32>
    %93 = arith.mulf %83, %92 : vector<16x128xf32>
    %94 = arith.addf %90, %93 : vector<16x128xf32>
    %95 = math.tanh %94 : vector<16x128xf32>
    %cst_37 = arith.constant 1.000000e+00 : f32
    %96 = vector.broadcast %cst_37 : f32 to vector<16x128xf32>
    %97 = arith.subf %96, %89 : vector<16x128xf32>
    %98 = arith.mulf %97, %95 : vector<16x128xf32>
    %c0_38 = arith.constant 0 : index
    %c0_39 = arith.constant 0 : index
    %c0_40 = arith.constant 0 : index
    %99 = vector.load %arg10[%c0_38, %c0_39, %c0_40] : memref<1x16x128xf32, #tpu.memory_space<vmem>>, vector<1x16x128xf32>
    %100 = vector.shape_cast %99 : vector<1x16x128xf32> to vector<16x128xf32>
    %101 = vector.shape_cast %98 : vector<16x128xf32> to vector<1x16x128xf32>
    tpu.vector_store %arg10[%c0_38, %c0_39, %c0_40], %101 {strides = array<i32>} : memref<1x16x128xf32, #tpu.memory_space<vmem>>, vector<1x16x128xf32>,
    %c3_i32 = arith.constant 3 : i32
    %c0_i32_41 = arith.constant 0 : i32
    %102 = arith.cmpi eq, %c3_i32, %c0_i32_41 : i32
    %c1_i32_42 = arith.constant 1 : i32
    %103 = arith.select %102, %c1_i32_42, %c3_i32 : i32
    %104 = arith.remsi %arg0, %103 : i32
    %c0_i32_43 = arith.constant 0 : i32
    %105 = arith.cmpi ne, %104, %c0_i32_43 : i32
    %c0_i32_44 = arith.constant 0 : i32
    %106 = arith.cmpi slt, %104, %c0_i32_44 : i32
    %c0_i32_45 = arith.constant 0 : i32
    %107 = arith.cmpi slt, %103, %c0_i32_45 : i32
    %108 = arith.xori %106, %107 : i1
    %109 = arith.andi %108, %105 : i1
    %110 = arith.addi %104, %103 : i32
    %111 = arith.select %109, %110, %104 : i32
    %c0_i32_46 = arith.constant 0 : i32
    %112 = arith.cmpi eq, %111, %c0_i32_46 : i32
    %113 = arith.extui %112 : i1 to i32
    %c0_i32_47 = arith.constant 0 : i32
    %114 = arith.cmpi ne, %113, %c0_i32_47 : i32
    scf.if %114 {
      %c0_52 = arith.constant 0 : index
      %c0_53 = arith.constant 0 : index
      %c0_54 = arith.constant 0 : index
      %121 = vector.load %arg11[%c0_52, %c0_53, %c0_54] : memref<3x16x128xf32, #tpu.memory_space<vmem>>, vector<1x16x128xf32>
      %122 = vector.shape_cast %121 : vector<1x16x128xf32> to vector<16x128xf32>
      %123 = vector.shape_cast %98 : vector<16x128xf32> to vector<1x16x128xf32>
      tpu.vector_store %arg11[%c0_52, %c0_53, %c0_54], %123 {strides = array<i32>} : memref<3x16x128xf32, #tpu.memory_space<vmem>>, vector<1x16x128xf32>,
    } else {
    }
    %c1_i32_48 = arith.constant 1 : i32
    %115 = arith.cmpi eq, %111, %c1_i32_48 : i32
    %116 = arith.extui %115 : i1 to i32
    %c0_i32_49 = arith.constant 0 : i32
    %117 = arith.cmpi ne, %116, %c0_i32_49 : i32
    scf.if %117 {
      %c1_52 = arith.constant 1 : index
      %c0_53 = arith.constant 0 : index
      %c0_54 = arith.constant 0 : index
      %121 = vector.load %arg11[%c1_52, %c0_53, %c0_54] : memref<3x16x128xf32, #tpu.memory_space<vmem>>, vector<1x16x128xf32>
      %122 = vector.shape_cast %121 : vector<1x16x128xf32> to vector<16x128xf32>
      %123 = vector.shape_cast %98 : vector<16x128xf32> to vector<1x16x128xf32>
      tpu.vector_store %arg11[%c1_52, %c0_53, %c0_54], %123 {strides = array<i32>} : memref<3x16x128xf32, #tpu.memory_space<vmem>>, vector<1x16x128xf32>,
    } else {
    }
    %c2_i32_50 = arith.constant 2 : i32
    %118 = arith.cmpi eq, %111, %c2_i32_50 : i32
    %119 = arith.extui %118 : i1 to i32
    %c0_i32_51 = arith.constant 0 : i32
    %120 = arith.cmpi ne, %119, %c0_i32_51 : i32
    scf.if %120 {
      %c2_52 = arith.constant 2 : index
      %c0_53 = arith.constant 0 : index
      %c0_54 = arith.constant 0 : index
      %121 = vector.load %arg11[%c2_52, %c0_53, %c0_54] : memref<3x16x128xf32, #tpu.memory_space<vmem>>, vector<1x16x128xf32>
      %122 = vector.shape_cast %121 : vector<1x16x128xf32> to vector<16x128xf32>
      %123 = vector.shape_cast %98 : vector<16x128xf32> to vector<1x16x128xf32>
      tpu.vector_store %arg11[%c2_52, %c0_53, %c0_54], %123 {strides = array<i32>} : memref<3x16x128xf32, #tpu.memory_space<vmem>>, vector<1x16x128xf32>,
    } else {
    }
    return
  }
  func.func @transform_0(%arg0: i32) -> (i32, i32, i32) {
    %c0_i32 = arith.constant 0 : i32
    %c0_i32_0 = arith.constant 0 : i32
    %c0_i32_1 = arith.constant 0 : i32
    return %arg0, %c0_i32, %c0_i32_0 : i32, i32, i32
  }
  func.func @transform_1(%arg0: i32) -> (i32, i32, i32) {
    %c0_i32 = arith.constant 0 : i32
    %c0_i32_0 = arith.constant 0 : i32
    %c0_i32_1 = arith.constant 0 : i32
    return %arg0, %c0_i32, %c0_i32_0 : i32, i32, i32
  }
  func.func @transform_2(%arg0: i32) -> (i32, i32) {
    %c0_i32 = arith.constant 0 : i32
    %c0_i32_0 = arith.constant 0 : i32
    %c0_i32_1 = arith.constant 0 : i32
    return %c0_i32, %c0_i32_0 : i32, i32
  }
  func.func @transform_3(%arg0: i32) -> (i32, i32) {
    %c0_i32 = arith.constant 0 : i32
    %c0_i32_0 = arith.constant 0 : i32
    %c0_i32_1 = arith.constant 0 : i32
    return %c0_i32, %c0_i32_0 : i32, i32
  }
  func.func @transform_4(%arg0: i32) -> (i32, i32) {
    %c0_i32 = arith.constant 0 : i32
    %c0_i32_0 = arith.constant 0 : i32
    %c0_i32_1 = arith.constant 0 : i32
    return %c0_i32, %c0_i32_0 : i32, i32
  }
  func.func @transform_5(%arg0: i32) -> (i32, i32) {
    %c0_i32 = arith.constant 0 : i32
    %c0_i32_0 = arith.constant 0 : i32
    %c0_i32_1 = arith.constant 0 : i32
    return %c0_i32, %c0_i32_0 : i32, i32
  }
  func.func @transform_6(%arg0: i32) -> (i32, i32) {
    %c0_i32 = arith.constant 0 : i32
    %c0_i32_0 = arith.constant 0 : i32
    %c0_i32_1 = arith.constant 0 : i32
    return %c0_i32, %c0_i32_0 : i32, i32
  }
  func.func @transform_7(%arg0: i32) -> (i32, i32) {
    %c0_i32 = arith.constant 0 : i32
    %c0_i32_0 = arith.constant 0 : i32
    %c0_i32_1 = arith.constant 0 : i32
    return %c0_i32, %c0_i32_0 : i32, i32
  }
  func.func @transform_8(%arg0: i32) -> (i32, i32) {
    %c0_i32 = arith.constant 0 : i32
    %c0_i32_0 = arith.constant 0 : i32
    %c0_i32_1 = arith.constant 0 : i32
    return %c0_i32, %c0_i32_0 : i32, i32
  }
  func.func @transform_9(%arg0: i32) -> (i32, i32, i32) {
    %c0_i32 = arith.constant 0 : i32
    %c0_i32_0 = arith.constant 0 : i32
    %c0_i32_1 = arith.constant 0 : i32
    return %arg0, %c0_i32, %c0_i32_0 : i32, i32, i32
  }
}

</mosaic_0001>

<llo_original>
// kernel: tpu_custom_call.1
$region0: #{tpu_custom_call.1}
  #allocation0 [shape = 'u32[]', space=smem, size = 0x4, offset = 0x4, fixed_abs, tag = 'smem constant byte address 0x4 - core index']
  #allocation1 [shape = 'u32[144,128]{1,0:T(1,128)}', space=vmem, size = 0x12000, scoped, tag = 'internal scratch']
  #allocation2 [shape = 'f32[3,16,128]{2,1,0:T(8,128)}', space=vmem, size = 0x6000, scoped, tag = 'scratch operand']
  %s0 = inlined_call_operand.hbm [shape: bf16[5,16,16], index: 0, kind: input, shape index: {}]
  %s1 = inlined_call_operand.hbm [shape: bf16[5,16,128], index: 1, kind: input, shape index: {}]
  %s2 = inlined_call_operand.hbm [shape: bf16[128,128], index: 2, kind: input, shape index: {}]
  %s3 = inlined_call_operand.vmem [shape: f32[1,128], index: 3, kind: input, shape index: {}]
  %s4 = inlined_call_operand.hbm [shape: bf16[128,128], index: 4, kind: input, shape index: {}]
  %s5 = inlined_call_operand.vmem [shape: f32[1,128], index: 5, kind: input, shape index: {}]
  %s6 = inlined_call_operand.hbm [shape: bf16[256,384], index: 6, kind: input, shape index: {}]
  %s7 = inlined_call_operand.vmem [shape: f32[1,384], index: 7, kind: input, shape index: {}]
  %s8 = inlined_call_operand.vmem [shape: f32[1,128], index: 8, kind: input, shape index: {}]
  %s9 = inlined_call_operand.hbm [shape: f32[5,16,128], index: 9, kind: output, shape index: {}]
  %s10 = sld [smem:[#allocation0]]
  $region105: #{tpu_custom_call.1} parent=0
    _
  %s12 = ssub.s32 1, %s10
  %s13 = scalar_select 0, %s12, %s10
  $region1: #{tpu_custom_call.1} parent=0
    #allocation3 [shape = 'u8[8192]{0}', space=vmem, size = 0x2000, scoped, tag = 'input window, operand 0']
    #allocation4 [shape = 's32[2]{0}', space=sflag, size = 0x8, scoped, tag = 'scoped memory for tpu_custom_call.1']
    #allocation5 [shape = 's32[2]{0}', space=sflag, size = 0x8, scoped, tag = 'scoped memory for tpu_custom_call.1']
    #allocation6 [shape = 'u8[8192]{0}', space=vmem, size = 0x2000, scoped, tag = 'input window, operand 1']
    #allocation7 [shape = 's32[2]{0}', space=sflag, size = 0x8, scoped, tag = 'scoped memory for tpu_custom_call.1']
    #allocation8 [shape = 'u8[32768]{0}', space=vmem, size = 0x8000, scoped, tag = 'input window, operand 2, single buffered']
    #allocation9 [shape = 'u8[32768]{0}', space=vmem, size = 0x8000, scoped, tag = 'input window, operand 4, single buffered']
    #allocation10 [shape = 's32[1]{0}', space=sflag, size = 0x4, scoped, tag = 'scoped memory for tpu_custom_call.1']
    #allocation11 [shape = 'u8[196608]{0}', space=vmem, size = 0x30000, scoped, tag = 'input window, operand 6, single buffered']
    #allocation12 [shape = 'u8[16384]{0}', space=vmem, size = 0x4000, scoped, tag = 'output window, operand 0']
    %14 = vsyncpa [#allocation4], 0
    %s15 = scalar_lea.sflag [#allocation4], 1
    %16 = vsyncpa %s15, 0
    %17 = vsyncpa [#allocation7], 0
    %s18 = scalar_lea.sflag [#allocation7], 1
    %19 = vsyncpa %s18, 0
    %20 = vsyncpa [#allocation10], 0
    %21 = vsyncpa [#allocation5], 0
    %s22 = scalar_lea.sflag [#allocation5], 1
    %23 = vsyncpa %s22, 0
    loop: start=0, step=1, limit=7
    $region2: #{tpu_custom_call.1} parent=1 // loop_pre_header
      _
    $region3: #{tpu_custom_call.1} parent=1 // loop_header
      %s25 = sphi 0, %s29
      %p26 = scmp.ge.s32.totalorder %s25, 7
      %s35 = sphi 0, %s37
      %s38 = sphi 0, %s35
      %s39 = sphi 0, %s38
      %s55 = sphi 0, %s39
      %s61 = sphi 0, %s63
      %s64 = sphi 0, %s61
      %s65 = sphi 0, %s64
      %s81 = sphi 0, %s65
      %s85 = sphi 0, %s85
      %s87 = sphi 0, %s85
      %s88 = sphi 0, %s87
      %s102 = sphi 0, %s88
      %s106 = sphi 0, %s106
      %s108 = sphi 0, %s106
      %s109 = sphi 0, %s108
      %s123 = sphi 0, %s109
      %s127 = sphi 0, %s127
      %s129 = sphi 0, %s127
      %s130 = sphi 0, %s129
      %s144 = sphi 0, %s130
      %s148 = sphi 0, %s148
      %s150 = sphi 0, %s148
      %s151 = sphi 0, %s150
      %s165 = sphi 0, %s151
      %s169 = sphi 0, %s169
      %s171 = sphi 0, %s169
      %s172 = sphi 0, %s171
      %s186 = sphi 0, %s172
      %s190 = sphi 0, %s190
      %s192 = sphi 0, %s190
      %s193 = sphi 0, %s192
      %s207 = sphi 0, %s193
      %s211 = sphi 0, %s211
      %s213 = sphi 0, %s211
      %s214 = sphi 0, %s213
      %s228 = sphi 0, %s214
      %s234 = sphi 0, %s236
      %s237 = sphi 0, %s234
      %s238 = sphi 0, %s237
      %s254 = sphi 0, %s238
    $region4: #{tpu_custom_call.1} parent=1 // loop_header_branch
      %28 = sbr.rel (%p26) target = $region8
    $region5: #{tpu_custom_call.1} parent=1 // loop_body
      %s30 = ssub.s32 %s25, 1
      %s31 = ssub.s32 %s25, 2
      %s32 = sadd.s32 %s25, 1
      %s33 = ssub.s32 %s25, %s32
      %p34 = scmp.eq.s32.totalorder %s33, 0
      %s36 = sadd.s32 %s35, 1
      %s37 = scalar_select %p34, %s35, %s36
      %p40 = pneg %p34
      %p41 = scmp.eq.s32.totalorder %s25, 4
      %p42 = por %p40, %p41
      %p43 = scmp.ne.s32.totalorder %s35, %s38
      %p44 = scmp.eq.s32.totalorder %s25, 0
      %p45 = por %p43, %p44
      %p46 = scmp.ne.s32.totalorder %s35, %s38
      %p47 = scmp.eq.s32.totalorder %s30, 4
      %p48 = por %p46, %p47
      %p49 = scmp.ne.s32.totalorder %s38, %s39
      %p50 = scmp.eq.s32.totalorder %s30, 0
      %p51 = por %p49, %p50
      %p52 = scmp.ne.s32.totalorder %s38, %s39
      %p53 = scmp.eq.s32.totalorder %s31, 4
      %p54 = por %p52, %p53
      %p56 = scmp.ne.s32.totalorder %s39, %s55
      %p57 = scmp.eq.s32.totalorder %s31, 0
      %p58 = por %p56, %p57
      %s59 = ssub.s32 %s25, %s32
      %p60 = scmp.eq.s32.totalorder %s59, 0
      %s62 = sadd.s32 %s61, 1
      %s63 = scalar_select %p60, %s61, %s62
      %p66 = pneg %p60
      %p67 = scmp.eq.s32.totalorder %s25, 4
      %p68 = por %p66, %p67
      %p69 = scmp.ne.s32.totalorder %s61, %s64
      %p70 = scmp.eq.s32.totalorder %s25, 0
      %p71 = por %p69, %p70
      %p72 = scmp.ne.s32.totalorder %s61, %s64
      %p73 = scmp.eq.s32.totalorder %s30, 4
      %p74 = por %p72, %p73
      %p75 = scmp.ne.s32.totalorder %s64, %s65
      %p76 = scmp.eq.s32.totalorder %s30, 0
      %p77 = por %p75, %p76
      %p78 = scmp.ne.s32.totalorder %s64, %s65
      %p79 = scmp.eq.s32.totalorder %s31, 4
      %p80 = por %p78, %p79
      %p82 = scmp.ne.s32.totalorder %s65, %s81
      %p83 = scmp.eq.s32.totalorder %s31, 0
      %p84 = por %p82, %p83
      %s86 = sadd.s32 %s85, 1
      %p89 = scmp.eq.s32.totalorder %s25, 4
      %p90 = scmp.ne.s32.totalorder %s85, %s87
      %p91 = scmp.eq.s32.totalorder %s25, 0
      %p92 = por %p90, %p91
      %p93 = scmp.ne.s32.totalorder %s85, %s87
      %p94 = scmp.eq.s32.totalorder %s30, 4
      %p95 = por %p93, %p94
      %p96 = scmp.ne.s32.totalorder %s87, %s88
      %p97 = scmp.eq.s32.totalorder %s30, 0
      %p98 = por %p96, %p97
      %p99 = scmp.ne.s32.totalorder %s87, %s88
      %p100 = scmp.eq.s32.totalorder %s31, 4
      %p101 = por %p99, %p100
      %p103 = scmp.ne.s32.totalorder %s88, %s102
      %p104 = scmp.eq.s32.totalorder %s31, 0
      %p105 = por %p103, %p104
      %s107 = sadd.s32 %s106, 1
      %p110 = scmp.eq.s32.totalorder %s25, 4
      %p111 = scmp.ne.s32.totalorder %s106, %s108
      %p112 = scmp.eq.s32.totalorder %s25, 0
      %p113 = por %p111, %p112
      %p114 = scmp.ne.s32.totalorder %s106, %s108
      %p115 = scmp.eq.s32.totalorder %s30, 4
      %p116 = por %p114, %p115
      %p117 = scmp.ne.s32.totalorder %s108, %s109
      %p118 = scmp.eq.s32.totalorder %s30, 0
      %p119 = por %p117, %p118
      %p120 = scmp.ne.s32.totalorder %s108, %s109
      %p121 = scmp.eq.s32.totalorder %s31, 4
      %p122 = por %p120, %p121
      %p124 = scmp.ne.s32.totalorder %s109, %s123
      %p125 = scmp.eq.s32.totalorder %s31, 0
      %p126 = por %p124, %p125
      %s128 = sadd.s32 %s127, 1
      %p131 = scmp.eq.s32.totalorder %s25, 4
      %p132 = scmp.ne.s32.totalorder %s127, %s129
      %p133 = scmp.eq.s32.totalorder %s25, 0
      %p134 = por %p132, %p133
      %p135 = scmp.ne.s32.totalorder %s127, %s129
      %p136 = scmp.eq.s32.totalorder %s30, 4
      %p137 = por %p135, %p136
      %p138 = scmp.ne.s32.totalorder %s129, %s130
      %p139 = scmp.eq.s32.totalorder %s30, 0
      %p140 = por %p138, %p139
      %p141 = scmp.ne.s32.totalorder %s129, %s130
      %p142 = scmp.eq.s32.totalorder %s31, 4
      %p143 = por %p141, %p142
      %p145 = scmp.ne.s32.totalorder %s130, %s144
      %p146 = scmp.eq.s32.totalorder %s31, 0
      %p147 = por %p145, %p146
      %s149 = sadd.s32 %s148, 1
      %p152 = scmp.eq.s32.totalorder %s25, 4
      %p153 = scmp.ne.s32.totalorder %s148, %s150
      %p154 = scmp.eq.s32.totalorder %s25, 0
      %p155 = por %p153, %p154
      %p156 = scmp.ne.s32.totalorder %s148, %s150
      %p157 = scmp.eq.s32.totalorder %s30, 4
      %p158 = por %p156, %p157
      %p159 = scmp.ne.s32.totalorder %s150, %s151
      %p160 = scmp.eq.s32.totalorder %s30, 0
      %p161 = por %p159, %p160
      %p162 = scmp.ne.s32.totalorder %s150, %s151
      %p163 = scmp.eq.s32.totalorder %s31, 4
      %p164 = por %p162, %p163
      %p166 = scmp.ne.s32.totalorder %s151, %s165
      %p167 = scmp.eq.s32.totalorder %s31, 0
      %p168 = por %p166, %p167
      %s170 = sadd.s32 %s169, 1
      %p173 = scmp.eq.s32.totalorder %s25, 4
      %p174 = scmp.ne.s32.totalorder %s169, %s171
      %p175 = scmp.eq.s32.totalorder %s25, 0
      %p176 = por %p174, %p175
      %p177 = scmp.ne.s32.totalorder %s169, %s171
      %p178 = scmp.eq.s32.totalorder %s30, 4
      %p179 = por %p177, %p178
      %p180 = scmp.ne.s32.totalorder %s171, %s172
      %p181 = scmp.eq.s32.totalorder %s30, 0
      %p182 = por %p180, %p181
      %p183 = scmp.ne.s32.totalorder %s171, %s172
      %p184 = scmp.eq.s32.totalorder %s31, 4
      %p185 = por %p183, %p184
      %p187 = scmp.ne.s32.totalorder %s172, %s186
      %p188 = scmp.eq.s32.totalorder %s31, 0
      %p189 = por %p187, %p188
      %s191 = sadd.s32 %s190, 1
      %p194 = scmp.eq.s32.totalorder %s25, 4
      %p195 = scmp.ne.s32.totalorder %s190, %s192
      %p196 = scmp.eq.s32.totalorder %s25, 0
      %p197 = por %p195, %p196
      %p198 = scmp.ne.s32.totalorder %s190, %s192
      %p199 = scmp.eq.s32.totalorder %s30, 4
      %p200 = por %p198, %p199
      %p201 = scmp.ne.s32.totalorder %s192, %s193
      %p202 = scmp.eq.s32.totalorder %s30, 0
      %p203 = por %p201, %p202
      %p204 = scmp.ne.s32.totalorder %s192, %s193
      %p205 = scmp.eq.s32.totalorder %s31, 4
      %p206 = por %p204, %p205
      %p208 = scmp.ne.s32.totalorder %s193, %s207
      %p209 = scmp.eq.s32.totalorder %s31, 0
      %p210 = por %p208, %p209
      %s212 = sadd.s32 %s211, 1
      %p215 = scmp.eq.s32.totalorder %s25, 4
      %p216 = scmp.ne.s32.totalorder %s211, %s213
      %p217 = scmp.eq.s32.totalorder %s25, 0
      %p218 = por %p216, %p217
      %p219 = scmp.ne.s32.totalorder %s211, %s213
      %p220 = scmp.eq.s32.totalorder %s30, 4
      %p221 = por %p219, %p220
      %p222 = scmp.ne.s32.totalorder %s213, %s214
      %p223 = scmp.eq.s32.totalorder %s30, 0
      %p224 = por %p222, %p223
      %p225 = scmp.ne.s32.totalorder %s213, %s214
      %p226 = scmp.eq.s32.totalorder %s31, 4
      %p227 = por %p225, %p226
      %p229 = scmp.ne.s32.totalorder %s214, %s228
      %p230 = scmp.eq.s32.totalorder %s31, 0
      %p231 = por %p229, %p230
      %s232 = ssub.s32 %s25, %s32
      %p233 = scmp.eq.s32.totalorder %s232, 0
      %s235 = sadd.s32 %s234, 1
      %s236 = scalar_select %p233, %s234, %s235
      %p239 = pneg %p233
      %p240 = scmp.eq.s32.totalorder %s25, 4
      %p241 = por %p239, %p240
      %p242 = scmp.ne.s32.totalorder %s234, %s237
      %p243 = scmp.eq.s32.totalorder %s25, 0
      %p244 = por %p242, %p243
      %p245 = scmp.ne.s32.totalorder %s234, %s237
      %p246 = scmp.eq.s32.totalorder %s30, 4
      %p247 = por %p245, %p246
      %p248 = scmp.ne.s32.totalorder %s237, %s238
      %p249 = scmp.eq.s32.totalorder %s30, 0
      %p250 = por %p248, %p249
      %p251 = scmp.ne.s32.totalorder %s237, %s238
      %p252 = scmp.eq.s32.totalorder %s31, 4
      %p253 = por %p251, %p252
      %p255 = scmp.ne.s32.totalorder %s238, %s254
      %p256 = scmp.eq.s32.totalorder %s31, 0
      %p257 = por %p255, %p256
      %p258 = scmp.le.s32.totalorder 1, %s25
      %p259 = scmp.lt.s32.totalorder %s25, 6
      %p260 = pnand %p258, %p259
      %p261 = pneg %p260
      // Predicated region
      $region9: #{tpu_custom_call.1} parent=5 // pred_check
        _
      $region10: #{tpu_custom_call.1} parent=5 // pred_check_branch
        %263 = sbr.rel (%p260) target = $region12
      $region11: #{tpu_custom_call.1} parent=5 // pred_region
        %s264 = ssub.s32 %s25, 1
        // Predicated region
        $region13: #{tpu_custom_call.1} parent=11 // pred_check
          %p265 = pneg %p98
        $region14: #{tpu_custom_call.1} parent=11 // pred_check_branch
          %267 = sbr.rel (%p265) target = $region16
        $region15: #{tpu_custom_call.1} parent=11 // pred_region
          %s269 = ssub.s32 1024, 1024
          %270 = vsyncadd [#allocation7], %s269
          %s271 = sshll.u32 [#allocation8], 4
          %s272 = int_to_ptr.vmem [resolvable:$true] %s271
          %277 = dma.hbm_to_vmem [thread:$0]  %s2, 1024, %s272, [#allocation7], 64, 64, 4
        $region16: #{tpu_custom_call.1} parent=11 // pred_fallthru
          _
        // Predicated region
        $region17: #{tpu_custom_call.1} parent=11 // pred_check
          %p278 = pneg %p119
        $region18: #{tpu_custom_call.1} parent=11 // pred_check_branch
          %280 = sbr.rel (%p278) target = $region20
        $region19: #{tpu_custom_call.1} parent=11 // pred_region
          _
        $region20: #{tpu_custom_call.1} parent=11 // pred_fallthru
          _
        // Predicated region
        $region21: #{tpu_custom_call.1} parent=11 // pred_check
          %p281 = pneg %p140
        $region22: #{tpu_custom_call.1} parent=11 // pred_check_branch
          %283 = sbr.rel (%p281) target = $region24
        $region23: #{tpu_custom_call.1} parent=11 // pred_region
          %s285 = ssub.s32 1024, 1024
          %286 = vsyncadd [#allocation10], %s285
          %s287 = sshll.u32 [#allocation9], 4
          %s288 = int_to_ptr.vmem [resolvable:$true] %s287
          %293 = dma.hbm_to_vmem [thread:$0]  %s4, 1024, %s288, [#allocation10], 64, 64, 4
        $region24: #{tpu_custom_call.1} parent=11 // pred_fallthru
          _
        // Predicated region
        $region25: #{tpu_custom_call.1} parent=11 // pred_check
          %p294 = pneg %p161
        $region26: #{tpu_custom_call.1} parent=11 // pred_check_branch
          %296 = sbr.rel (%p294) target = $region28
        $region27: #{tpu_custom_call.1} parent=11 // pred_region
          _
        $region28: #{tpu_custom_call.1} parent=11 // pred_fallthru
          _
        // Predicated region
        $region29: #{tpu_custom_call.1} parent=11 // pred_check
          %p297 = pneg %p182
        $region30: #{tpu_custom_call.1} parent=11 // pred_check_branch
          %299 = sbr.rel (%p297) target = $region32
        $region31: #{tpu_custom_call.1} parent=11 // pred_region
          %s301 = ssub.s32 6144, 6144
          %302 = vsyncadd [#allocation10], %s301
          %s303 = sshll.u32 [#allocation11], 4
          %s304 = int_to_ptr.vmem [resolvable:$true] %s303
          %309 = dma.hbm_to_vmem [thread:$0]  %s6, 6144, %s304, [#allocation10], 192, 192, 12
        $region32: #{tpu_custom_call.1} parent=11 // pred_fallthru
          _
        // Predicated region
        $region33: #{tpu_custom_call.1} parent=11 // pred_check
          %p310 = pneg %p203
        $region34: #{tpu_custom_call.1} parent=11 // pred_check_branch
          %312 = sbr.rel (%p310) target = $region36
        $region35: #{tpu_custom_call.1} parent=11 // pred_region
          _
        $region36: #{tpu_custom_call.1} parent=11 // pred_fallthru
          _
        // Predicated region
        $region37: #{tpu_custom_call.1} parent=11 // pred_check
          %p313 = pneg %p224
        $region38: #{tpu_custom_call.1} parent=11 // pred_check_branch
          %315 = sbr.rel (%p313) target = $region40
        $region39: #{tpu_custom_call.1} parent=11 // pred_region
          _
        $region40: #{tpu_custom_call.1} parent=11 // pred_fallthru
          _
      $region12: #{tpu_custom_call.1} parent=5 // pred_fallthru
        _
      %p316 = scmp.lt.s32.totalorder %s25, 5
      // Predicated region
      $region41: #{tpu_custom_call.1} parent=5 // pred_check
        %p317 = pneg %p316
      $region42: #{tpu_custom_call.1} parent=5 // pred_check_branch
        %319 = sbr.rel (%p317) target = $region44
      $region43: #{tpu_custom_call.1} parent=5 // pred_region
        // Predicated region
        $region45: #{tpu_custom_call.1} parent=43 // pred_check
          %p320 = pneg %p45
        $region46: #{tpu_custom_call.1} parent=43 // pred_check_branch
          %322 = sbr.rel (%p320) target = $region48
        $region47: #{tpu_custom_call.1} parent=43 // pred_region
          %s323 = sand.u32 %s35, 1
          %s324 = scalar_lea.sflag [#allocation4], %s323
          %s325 = sand.u32 %s35, 1
          %s326 = smul.addr %s325, 8
          %s327 = scalar_lea.vmem [#allocation3], %s326
          %s329 = ssub.s32 128, 128
          %330 = vsyncadd %s324, %s329
          %s331 = smul.addr %s25, 2
          %s332 = smul.addr %s331, 64
          %s333 = scalar_lea.hbm %s0, %s332
          %s334 = sshll.u32 %s327, 4
          %s335 = int_to_ptr.vmem [resolvable:$true] %s334
          %340 = dma.hbm_to_vmem [thread:$0]  %s333, 128, %s335, %s324, 64, 64, 4
        $region48: #{tpu_custom_call.1} parent=43 // pred_fallthru
          _
        // Predicated region
        $region49: #{tpu_custom_call.1} parent=43 // pred_check
          %p341 = pneg %p71
        $region50: #{tpu_custom_call.1} parent=43 // pred_check_branch
          %343 = sbr.rel (%p341) target = $region52
        $region51: #{tpu_custom_call.1} parent=43 // pred_region
          %s344 = sand.u32 %s25, 1
          %s345 = scalar_lea.sflag [#allocation7], %s344
          %s346 = sand.u32 %s61, 1
          %s347 = smul.addr %s346, 8
          %s348 = scalar_lea.vmem [#allocation6], %s347
          %s350 = ssub.s32 128, 128
          %351 = vsyncadd %s345, %s350
          %s352 = smul.addr %s25, 2
          %s353 = smul.addr %s352, 64
          %s354 = scalar_lea.hbm %s1, %s353
          %s355 = sshll.u32 %s348, 4
          %s356 = int_to_ptr.vmem [resolvable:$true] %s355
          %361 = dma.hbm_to_vmem [thread:$0]  %s354, 128, %s356, %s345, 64, 64, 4
        $region52: #{tpu_custom_call.1} parent=43 // pred_fallthru
          _
      $region44: #{tpu_custom_call.1} parent=5 // pred_fallthru
        _
      %p362 = scmp.le.s32.totalorder 1, %s25
      %p363 = scmp.lt.s32.totalorder %s25, 6
      %p364 = pnand %p362, %p363
      %p365 = pneg %p364
      // Predicated region
      $region53: #{tpu_custom_call.1} parent=5 // pred_check
        _
      $region54: #{tpu_custom_call.1} parent=5 // pred_check_branch
        %367 = sbr.rel (%p364) target = $region56
      $region55: #{tpu_custom_call.1} parent=5 // pred_region
        %s368 = ssub.s32 %s25, 1
        %s369 = sand.u32 %s38, 1
        %s370 = scalar_lea.sflag [#allocation4], %s369
        %s371 = sand.u32 %s38, 1
        %s372 = smul.addr %s371, 8
        %s373 = scalar_lea.vmem [#allocation3], %s372
        // Predicated region
        $region57: #{tpu_custom_call.1} parent=55 // pred_check
          %p374 = pneg %p51
        $region58: #{tpu_custom_call.1} parent=55 // pred_check_branch
          %376 = sbr.rel (%p374) target = $region60
        $region59: #{tpu_custom_call.1} parent=55 // pred_region
          %377 = dma.done %s370, 128
        $region60: #{tpu_custom_call.1} parent=55 // pred_fallthru
          _
        %s378 = sand.u32 %s30, 1
        %s379 = scalar_lea.sflag [#allocation7], %s378
        %s380 = sand.u32 %s64, 1
        %s381 = smul.addr %s380, 8
        %s382 = scalar_lea.vmem [#allocation6], %s381
        // Predicated region
        $region61: #{tpu_custom_call.1} parent=55 // pred_check
          %p383 = pneg %p77
        $region62: #{tpu_custom_call.1} parent=55 // pred_check_branch
          %385 = sbr.rel (%p383) target = $region64
        $region63: #{tpu_custom_call.1} parent=55 // pred_region
          %386 = dma.done %s379, 128
        $region64: #{tpu_custom_call.1} parent=55 // pred_fallthru
          _
        // Predicated region
        $region65: #{tpu_custom_call.1} parent=55 // pred_check
          %p387 = pneg %p98
        $region66: #{tpu_custom_call.1} parent=55 // pred_check_branch
          %389 = sbr.rel (%p387) target = $region68
        $region67: #{tpu_custom_call.1} parent=55 // pred_region
          %390 = dma.done [#allocation7], 1024
        $region68: #{tpu_custom_call.1} parent=55 // pred_fallthru
          _
        // Predicated region
        $region69: #{tpu_custom_call.1} parent=55 // pred_check
          %p391 = pneg %p140
        $region70: #{tpu_custom_call.1} parent=55 // pred_check_branch
          %393 = sbr.rel (%p391) target = $region72
        $region71: #{tpu_custom_call.1} parent=55 // pred_region
          %394 = dma.done [#allocation10], 1024
        $region72: #{tpu_custom_call.1} parent=55 // pred_fallthru
          _
        // Predicated region
        $region73: #{tpu_custom_call.1} parent=55 // pred_check
          %p395 = pneg %p182
        $region74: #{tpu_custom_call.1} parent=55 // pred_check_branch
          %397 = sbr.rel (%p395) target = $region76
        $region75: #{tpu_custom_call.1} parent=55 // pred_region
          %398 = dma.done [#allocation10], 6144
        $region76: #{tpu_custom_call.1} parent=55 // pred_fallthru
          _
        %s399 = sand.u32 %s38, 1
        %s400 = scalar_lea.sflag [#allocation4], %s399
        %s401 = sand.u32 %s38, 1
        %s402 = smul.addr %s401, 8
        %s403 = scalar_lea.vmem [#allocation3], %s402
        %p404 = pneg %p51
        %p405 = pneg %p48
        %s406 = sand.u32 %s30, 1
        %s407 = scalar_lea.sflag [#allocation7], %s406
        %s408 = sand.u32 %s64, 1
        %s409 = smul.addr %s408, 8
        %s410 = scalar_lea.vmem [#allocation6], %s409
        %p411 = pneg %p77
        %p412 = pneg %p74
        %p413 = pneg %p98
        %p414 = pneg %p95
        %p415 = pneg %p119
        %p416 = pneg %p116
        %p417 = pneg %p140
        %p418 = pneg %p137
        %p419 = pneg %p161
        %p420 = pneg %p158
        %p421 = pneg %p182
        %p422 = pneg %p179
        %p423 = pneg %p203
        %p424 = pneg %p200
        %p425 = pneg %p224
        %p426 = pneg %p221
        %p427 = pneg %p250
        %p428 = pneg %p247
        %s429 = sand.u32 %s237, 1
        %s430 = scalar_lea.sflag [#allocation5], %s429
        %s431 = sand.u32 %s237, 1
        %s432 = smul.addr %s431, 16
        %s433 = scalar_lea.vmem [#allocation12], %s432
        %p435 = scmp.eq.s32.totalorder %s30, 0
        // Predicated region
        $region77: #{tpu_custom_call.1} parent=55 // pred_check
          %p436 = pneg %p435
        $region78: #{tpu_custom_call.1} parent=55 // pred_check_branch
          %438 = sbr.rel (%p436) target = $region80
        $region79: #{tpu_custom_call.1} parent=55 // pred_region
          %439 = vst [vmem:[#allocation2] sm:$0xff] 0.0
          %440 = vst [vmem:[#allocation2 + $0x8] sm:$0xff] 0.0
          %441 = vst [vmem:[#allocation2 + $0x10] sm:$0xff] 0.0
          %442 = vst [vmem:[#allocation2 + $0x18] sm:$0xff] 0.0
          %443 = vst [vmem:[#allocation2 + $0x20] sm:$0xff] 0.0
          %444 = vst [vmem:[#allocation2 + $0x28] sm:$0xff] 0.0
        $region80: #{tpu_custom_call.1} parent=55 // pred_fallthru
          _
        %v445 = vld [vmem:[%s382] sm:$0xf]
        %v446 = vld [vmem:[%s382 + $0x4] sm:$0xf]
        %v447 = vld [vmem:[#allocation8] sm:$0xf]
        %v448 = vld [vmem:[#allocation8 + $0x4] sm:$0xf]
        %v449 = vld [vmem:[#allocation8 + $0x8] sm:$0xf]
        %v450 = vld [vmem:[#allocation8 + $0xc] sm:$0xf]
        %v451 = vld [vmem:[#allocation8 + $0x10] sm:$0xf]
        %v452 = vld [vmem:[#allocation8 + $0x14] sm:$0xf]
        %v453 = vld [vmem:[#allocation8 + $0x18] sm:$0xf]
        %v454 = vld [vmem:[#allocation8 + $0x1c] sm:$0xf]
        %v455 = vld [vmem:[#allocation8 + $0x20] sm:$0xf]
        %v456 = vld [vmem:[#allocation8 + $0x24] sm:$0xf]
        %v457 = vld [vmem:[#allocation8 + $0x28] sm:$0xf]
        %v458 = vld [vmem:[#allocation8 + $0x2c] sm:$0xf]
        %v459 = vld [vmem:[#allocation8 + $0x30] sm:$0xf]
        %v460 = vld [vmem:[#allocation8 + $0x34] sm:$0xf]
        %v461 = vld [vmem:[#allocation8 + $0x38] sm:$0xf]
        %v462 = vld [vmem:[#allocation8 + $0x3c] sm:$0xf]
        %v465 = vunpack.c.l.b16 %v445
        %v466 = vunpack.c.l.b16 %v446
        %v467 = vpack.c.b16 %v466, %v465
        %v485 = vunpack.c.l.b16 %v447
        %v486 = vunpack.c.l.b16 %v448
        %v487 = vunpack.c.l.b16 %v449
        %v488 = vunpack.c.l.b16 %v450
        %v489 = vunpack.c.l.b16 %v451
        %v490 = vunpack.c.l.b16 %v452
        %v491 = vunpack.c.l.b16 %v453
        %v492 = vunpack.c.l.b16 %v454
        %v493 = vunpack.c.l.b16 %v455
        %v494 = vunpack.c.l.b16 %v456
        %v495 = vunpack.c.l.b16 %v457
        %v496 = vunpack.c.l.b16 %v458
        %v497 = vunpack.c.l.b16 %v459
        %v498 = vunpack.c.l.b16 %v460
        %v499 = vunpack.c.l.b16 %v461
        %v500 = vunpack.c.l.b16 %v462
        %v501 = vpack.c.b16 %v486, %v485
        %v502 = vpack.c.b16 %v488, %v487
        %v503 = vpack.c.b16 %v490, %v489
        %v504 = vpack.c.b16 %v492, %v491
        %v505 = vpack.c.b16 %v494, %v493
        %v506 = vpack.c.b16 %v496, %v495
        %v507 = vpack.c.b16 %v498, %v497
        %v508 = vpack.c.b16 %v500, %v499
        %517 = vmatprep.subr.bf16.mxu0 0
        %518 = vmatpush1.bf16.msra.mxu0 %v501
        %519 = vmatprep.subr.bf16.mxu0 0
        %520 = vmatpush1.bf16.msra.mxu0 %v502
        %521 = vmatprep.subr.bf16.mxu0 0
        %522 = vmatpush1.bf16.msra.mxu0 %v503
        %523 = vmatprep.subr.bf16.mxu0 0
        %524 = vmatpush1.bf16.msra.mxu0 %v504
        %525 = vmatprep.subr.bf16.mxu0 0
        %526 = vmatpush1.bf16.msra.mxu0 %v505
        %527 = vmatprep.subr.bf16.mxu0 0
        %528 = vmatpush1.bf16.msra.mxu0 %v506
        %529 = vmatprep.subr.bf16.mxu0 0
        %530 = vmatpush1.bf16.msra.mxu0 %v507
        %531 = vmatprep.subr.bf16.mxu0 0
        %532 = vmatpush1.bf16.msra.mxu0 %v508
        %533 = vmatprep.subr.bf16.mxu0 0
        %534 = vmatpush1.bf16.msra.mxu0 0
        %535 = vmatprep.subr.bf16.mxu0 0
        %536 = vmatpush1.bf16.msra.mxu0 0
        %537 = vmatprep.subr.bf16.mxu0 0
        %538 = vmatpush1.bf16.msra.mxu0 0
        %539 = vmatprep.subr.bf16.mxu0 0
        %540 = vmatpush1.bf16.msra.mxu0 0
        %541 = vmatprep.subr.bf16.mxu0 0
        %542 = vmatpush1.bf16.msra.mxu0 0
        %543 = vmatprep.subr.bf16.mxu0 0
        %544 = vmatpush1.bf16.msra.mxu0 0
        %545 = vmatprep.subr.bf16.mxu0 0
        %546 = vmatpush1.bf16.msra.mxu0 0
        %547 = vmatprep.subr.bf16.mxu0 0
        %548 = vmatpush1.bf16.msra.mxu0 0
        %549 = vmatprep.mubr.bf16.mxu0 0
        %550 = vmatmul.mubr.bf16.gmra.mrb[0].mxu0 %v467
        %v551 = vpop.f32.mrb[0].mxu0
        %v552 = vadd.f32 0.0, %v551
        %v553 = vpop.f32.mrb[0].mxu0
        %v554 = vpop.f32.mrb[0].mxu0
        %v555 = vadd.f32 0.0, %v554
        %v556 = vpop.f32.mrb[0].mxu0
        %557 = vdwg.mxu0
        %v558 = vld [vmem:[%s373] sm:$0xf]
        %v559 = vld [vmem:[%s373 + $0x4] sm:$0xf]
        %v560 = vpack.c.bf16 %v555, %v552
        %v561 = vld [vmem:[%s3] sm:$0x1]
        %v563 = vlaneseq
        %v564 = vshrl.u32 %v563, 7
        %v565 = vsub.s32 0, %v564
        %v566 = vrot.slane %v561, %v565
        %v570 = vunpack.c.l.b16 %v558
        %v571 = vunpack.c.l.b16 %v559
        %v572 = vpack.c.b16 %v571, %v570
        %vm573 = vcmask 130048
        %v575 = vsel %vm573, %v572, 0
        %577 = vmatprep.subr.bf16.mxu0 0
        %578 = vmatpush1.bf16.msra.mxu0 %v560
        %579 = vmatprep.subr.bf16.mxu0 0
        %580 = vmatpush1.bf16.msra.mxu0 0
        %581 = vmatprep.subr.bf16.mxu0 0
        %582 = vmatpush1.bf16.msra.mxu0 0
        %583 = vmatprep.subr.bf16.mxu0 0
        %584 = vmatpush1.bf16.msra.mxu0 0
        %585 = vmatprep.subr.bf16.mxu0 0
        %586 = vmatpush1.bf16.msra.mxu0 0
        %587 = vmatprep.subr.bf16.mxu0 0
        %588 = vmatpush1.bf16.msra.mxu0 0
        %589 = vmatprep.subr.bf16.mxu0 0
        %590 = vmatpush1.bf16.msra.mxu0 0
        %591 = vmatprep.subr.bf16.mxu0 0
        %592 = vmatpush1.bf16.msra.mxu0 0
        %593 = vmatprep.subr.bf16.mxu0 0
        %594 = vmatpush1.bf16.msra.mxu0 0
        %595 = vmatprep.subr.bf16.mxu0 0
        %596 = vmatpush1.bf16.msra.mxu0 0
        %597 = vmatprep.subr.bf16.mxu0 0
        %598 = vmatpush1.bf16.msra.mxu0 0
        %599 = vmatprep.subr.bf16.mxu0 0
        %600 = vmatpush1.bf16.msra.mxu0 0
        %601 = vmatprep.subr.bf16.mxu0 0
        %602 = vmatpush1.bf16.msra.mxu0 0
        %603 = vmatprep.subr.bf16.mxu0 0
        %604 = vmatpush1.bf16.msra.mxu0 0
        %605 = vmatprep.subr.bf16.mxu0 0
        %606 = vmatpush1.bf16.msra.mxu0 0
        %607 = vmatprep.subr.bf16.mxu0 0
        %608 = vmatpush1.bf16.msra.mxu0 0
        %609 = vmatprep.mubr.bf16.mxu0 0
        %610 = vmatmul.mubr.bf16.gmra.mrb[0].mxu0 %v575
        %v611 = vpop.f32.mrb[0].mxu0
        %v612 = vadd.f32 %v566, %v611
        %v613 = vpop.f32.mrb[0].mxu0
        %v614 = vpop.f32.mrb[0].mxu0
        %v615 = vadd.f32 %v566, %v614
        %v616 = vpop.f32.mrb[0].mxu0
        %617 = vdwg.mxu0
        %v618 = vld [vmem:[#allocation2] sm:$0xff]
        %v619 = vld [vmem:[#allocation2 + $0x8] sm:$0xff]
        %v620 = vld [vmem:[#allocation2 + $0x10] sm:$0xff]
        %v621 = vld [vmem:[#allocation2 + $0x18] sm:$0xff]
        %v622 = vld [vmem:[#allocation2 + $0x20] sm:$0xff]
        %v623 = vld [vmem:[#allocation2 + $0x28] sm:$0xff]
        %v624 = vpack.c.bf16 %v619, %v618
        %v625 = vpack.c.bf16 %v621, %v620
        %v626 = vpack.c.bf16 %v623, %v622
        %v627 = vld [vmem:[#allocation9] sm:$0xf]
        %v628 = vld [vmem:[#allocation9 + $0x4] sm:$0xf]
        %v629 = vld [vmem:[#allocation9 + $0x8] sm:$0xf]
        %v630 = vld [vmem:[#allocation9 + $0xc] sm:$0xf]
        %v631 = vld [vmem:[#allocation9 + $0x10] sm:$0xf]
        %v632 = vld [vmem:[#allocation9 + $0x14] sm:$0xf]
        %v633 = vld [vmem:[#allocation9 + $0x18] sm:$0xf]
        %v634 = vld [vmem:[#allocation9 + $0x1c] sm:$0xf]
        %v635 = vld [vmem:[#allocation9 + $0x20] sm:$0xf]
        %v636 = vld [vmem:[#allocation9 + $0x24] sm:$0xf]
        %v637 = vld [vmem:[#allocation9 + $0x28] sm:$0xf]
        %v638 = vld [vmem:[#allocation9 + $0x2c] sm:$0xf]
        %v639 = vld [vmem:[#allocation9 + $0x30] sm:$0xf]
        %v640 = vld [vmem:[#allocation9 + $0x34] sm:$0xf]
        %v641 = vld [vmem:[#allocation9 + $0x38] sm:$0xf]
        %v642 = vld [vmem:[#allocation9 + $0x3c] sm:$0xf]
        %v659 = vunpack.c.l.b16 %v627
        %v660 = vunpack.c.l.b16 %v628
        %v661 = vunpack.c.l.b16 %v629
        %v662 = vunpack.c.l.b16 %v630
        %v663 = vunpack.c.l.b16 %v631
        %v664 = vunpack.c.l.b16 %v632
        %v665 = vunpack.c.l.b16 %v633
        %v666 = vunpack.c.l.b16 %v634
        %v667 = vunpack.c.l.b16 %v635
        %v668 = vunpack.c.l.b16 %v636
        %v669 = vunpack.c.l.b16 %v637
        %v670 = vunpack.c.l.b16 %v638
        %v671 = vunpack.c.l.b16 %v639
        %v672 = vunpack.c.l.b16 %v640
        %v673 = vunpack.c.l.b16 %v641
        %v674 = vunpack.c.l.b16 %v642
        %v675 = vpack.c.b16 %v660, %v659
        %v676 = vpack.c.b16 %v662, %v661
        %v677 = vpack.c.b16 %v664, %v663
        %v678 = vpack.c.b16 %v666, %v665
        %v679 = vpack.c.b16 %v668, %v667
        %v680 = vpack.c.b16 %v670, %v669
        %v681 = vpack.c.b16 %v672, %v671
        %v682 = vpack.c.b16 %v674, %v673
        %691 = vmatprep.subr.bf16.mxu0 0
        %692 = vmatpush1.bf16.msra.mxu0 %v675
        %693 = vmatprep.subr.bf16.mxu0 0
        %694 = vmatpush1.bf16.msra.mxu0 %v676
        %695 = vmatprep.subr.bf16.mxu0 0
        %696 = vmatpush1.bf16.msra.mxu0 %v677
        %697 = vmatprep.subr.bf16.mxu0 0
        %698 = vmatpush1.bf16.msra.mxu0 %v678
        %699 = vmatprep.subr.bf16.mxu0 0
        %700 = vmatpush1.bf16.msra.mxu0 %v679
        %701 = vmatprep.subr.bf16.mxu0 0
        %702 = vmatpush1.bf16.msra.mxu0 %v680
        %703 = vmatprep.subr.bf16.mxu0 0
        %704 = vmatpush1.bf16.msra.mxu0 %v681
        %705 = vmatprep.subr.bf16.mxu0 0
        %706 = vmatpush1.bf16.msra.mxu0 %v682
        %707 = vmatprep.subr.bf16.mxu0 0
        %708 = vmatpush1.bf16.msra.mxu0 0
        %709 = vmatprep.subr.bf16.mxu0 0
        %710 = vmatpush1.bf16.msra.mxu0 0
        %711 = vmatprep.subr.bf16.mxu0 0
        %712 = vmatpush1.bf16.msra.mxu0 0
        %713 = vmatprep.subr.bf16.mxu0 0
        %714 = vmatpush1.bf16.msra.mxu0 0
        %715 = vmatprep.subr.bf16.mxu0 0
        %716 = vmatpush1.bf16.msra.mxu0 0
        %717 = vmatprep.subr.bf16.mxu0 0
        %718 = vmatpush1.bf16.msra.mxu0 0
        %719 = vmatprep.subr.bf16.mxu0 0
        %720 = vmatpush1.bf16.msra.mxu0 0
        %721 = vmatprep.subr.bf16.mxu0 0
        %722 = vmatpush1.bf16.msra.mxu0 0
        %723 = vmatprep.mubr.bf16.mxu0 0
        %724 = vmatmul.mubr.bf16.gmra.mrb[0].mxu0 %v624
        %v725 = vpop.f32.mrb[0].mxu0
        %v726 = vadd.f32 0.0, %v725
        %v727 = vpop.f32.mrb[0].mxu0
        %v728 = vpop.f32.mrb[0].mxu0
        %v729 = vadd.f32 0.0, %v728
        %v730 = vpop.f32.mrb[0].mxu0
        %731 = vmatprep.mubr.bf16.mxu0 0
        %732 = vmatmul.mubr.bf16.gmra.mrb[0].mxu0 %v625
        %v733 = vpop.f32.mrb[0].mxu0
        %v734 = vadd.f32 0.0, %v733
        %v735 = vpop.f32.mrb[0].mxu0
        %v736 = vpop.f32.mrb[0].mxu0
        %v737 = vadd.f32 0.0, %v736
        %v738 = vpop.f32.mrb[0].mxu0
        %739 = vmatprep.mubr.bf16.mxu0 0
        %740 = vmatmul.mubr.bf16.gmra.mrb[0].mxu0 %v626
        %v741 = vpop.f32.mrb[0].mxu0
        %v742 = vadd.f32 0.0, %v741
        %v743 = vpop.f32.mrb[0].mxu0
        %v744 = vpop.f32.mrb[0].mxu0
        %v745 = vadd.f32 0.0, %v744
        %v746 = vpop.f32.mrb[0].mxu0
        %747 = vdwg.mxu0
        %v748 = vtanh.pop %v726
        %v749 = vtanh.pop %v729
        %v750 = vtanh.pop %v734
        %v751 = vtanh.pop %v737
        %v752 = vtanh.pop %v742
        %v753 = vtanh.pop %v745
        %v754 = vld [vmem:[%s5] sm:$0x1]
        %v756 = vlaneseq
        %v757 = vshrl.u32 %v756, 7
        %v758 = vsub.s32 0, %v757
        %v759 = vrot.slane %v754, %v758
        %v761 = vmul.f32 %v748, %v759
        %v762 = vmul.f32 %v749, %v759
        %v763 = vmul.f32 %v750, %v759
        %v764 = vmul.f32 %v751, %v759
        %v765 = vmul.f32 %v752, %v759
        %v766 = vmul.f32 %v753, %v759
        %767 = vadd.xlane.f32.xlu0 %v761
        %v768 = vpop.xlane.xlu0 %767
        %769 = vadd.xlane.f32.xlu0 %v762
        %v770 = vpop.xlane.xlu0 %769
        %771 = vadd.xlane.f32.xlu0 %v763
        %v772 = vpop.xlane.xlu0 %771
        %773 = vadd.xlane.f32.xlu0 %v764
        %v774 = vpop.xlane.xlu0 %773
        %775 = vadd.xlane.f32.xlu0 %v765
        %v776 = vpop.xlane.xlu0 %775
        %777 = vadd.xlane.f32.xlu0 %v766
        %v778 = vpop.xlane.xlu0 %777
        %v779 = vmax.f32 %v768, %v772
        %v780 = vmax.f32 %v770, %v774
        %v781 = vmax.f32 %v779, %v776
        %v782 = vmax.f32 %v780, %v778
        %v783 = vsub.f32 %v768, %v781
        %v784 = vsub.f32 %v770, %v782
        %v785 = vmul.f32 %v783, 1.442695
        %v786 = vpow.pop %v785
        %v787 = vmul.f32 %v784, 1.442695
        %v788 = vpow.pop %v787
        %p789 = scmp.ge.s32.totalorder %s30, 0
        %s790 = scalar_select %p789, 1, 0
        %s791 = scvt.s32.f32 %s790
        %v792 = vstv %s791
        %v793 = vmul.f32 %v786, %v792
        %v794 = vmul.f32 %v788, %v792
        %v795 = vsub.f32 %v772, %v781
        %v796 = vsub.f32 %v774, %v782
        %v797 = vmul.f32 %v795, 1.442695
        %v798 = vpow.pop %v797
        %v799 = vmul.f32 %v796, 1.442695
        %v800 = vpow.pop %v799
        %p801 = scmp.ge.s32.totalorder %s30, 1
        %s802 = scalar_select %p801, 1, 0
        %s803 = scvt.s32.f32 %s802
        %v804 = vstv %s803
        %v805 = vmul.f32 %v798, %v804
        %v806 = vmul.f32 %v800, %v804
        %v807 = vadd.f32 %v793, %v805
        %v808 = vadd.f32 %v794, %v806
        %v809 = vsub.f32 %v776, %v781
        %v810 = vsub.f32 %v778, %v782
        %v811 = vmul.f32 %v809, 1.442695
        %v812 = vpow.pop %v811
        %v813 = vmul.f32 %v810, 1.442695
        %v814 = vpow.pop %v813
        %p815 = scmp.ge.s32.totalorder %s30, 2
        %s816 = scalar_select %p815, 1, 0
        %s817 = scvt.s32.f32 %s816
        %v818 = vstv %s817
        %v819 = vmul.f32 %v812, %v818
        %v820 = vmul.f32 %v814, %v818
        %v821 = vadd.f32 %v807, %v819
        %v822 = vadd.f32 %v808, %v820
        %v823 = vrcp.pop %v821
        %v824 = vrcp.pop %v822
        %v825 = vmul.f32 %v793, %v823
        %v826 = vmul.f32 %v794, %v824
        %v827 = vld [vmem:[#allocation2] sm:$0xff]
        %v828 = vld [vmem:[#allocation2 + $0x8] sm:$0xff]
        %v829 = vmul.f32 %v825, %v827
        %v830 = vmul.f32 %v826, %v828
        %v831 = vmul.f32 %v805, %v823
        %v832 = vmul.f32 %v806, %v824
        %s833 = scalar_lea.vmem [#allocation2], 16
        %v834 = vld [vmem:[%s833] sm:$0xff]
        %v835 = vld [vmem:[%s833 + $0x8] sm:$0xff]
        %v836 = vmul.f32 %v831, %v834
        %v837 = vmul.f32 %v832, %v835
        %v838 = vadd.f32 %v829, %v836
        %v839 = vadd.f32 %v830, %v837
        %v840 = vmul.f32 %v819, %v823
        %v841 = vmul.f32 %v820, %v824
        %s842 = scalar_lea.vmem [#allocation2], 32
        %v843 = vld [vmem:[%s842] sm:$0xff]
        %v844 = vld [vmem:[%s842 + $0x8] sm:$0xff]
        %v845 = vmul.f32 %v840, %v843
        %v846 = vmul.f32 %v841, %v844
        %v847 = vadd.f32 %v838, %v845
        %v848 = vadd.f32 %v839, %v846
        %v849 = vpack.c.bf16 %v615, %v612
        %v850 = vpack.c.bf16 %v848, %v847
        %v851 = vld [vmem:[#allocation11] sm:$0xff]
        %v852 = vld [vmem:[#allocation11 + $0x8] sm:$0xf]
        %v853 = vld [vmem:[#allocation11 + $0xc] sm:$0xff]
        %v854 = vld [vmem:[#allocation11 + $0x14] sm:$0xf]
        %v855 = vld [vmem:[#allocation11 + $0x18] sm:$0xff]
        %v856 = vld [vmem:[#allocation11 + $0x20] sm:$0xf]
        %v857 = vld [vmem:[#allocation11 + $0x24] sm:$0xff]
        %v858 = vld [vmem:[#allocation11 + $0x2c] sm:$0xf]
        %v859 = vld [vmem:[#allocation11 + $0x30] sm:$0xff]
        %v860 = vld [vmem:[#allocation11 + $0x38] sm:$0xf]
        %v861 = vld [vmem:[#allocation11 + $0x3c] sm:$0xff]
        %v862 = vld [vmem:[#allocation11 + $0x44] sm:$0xf]
        %v863 = vld [vmem:[#allocation11 + $0x48] sm:$0xff]
        %v864 = vld [vmem:[#allocation11 + $0x50] sm:$0xf]
        %v865 = vld [vmem:[#allocation11 + $0x54] sm:$0xff]
        %v866 = vld [vmem:[#allocation11 + $0x5c] sm:$0xf]
        %v867 = vld [vmem:[#allocation11 + $0x60] sm:$0xff]
        %v868 = vld [vmem:[#allocation11 + $0x68] sm:$0xf]
        %v869 = vld [vmem:[#allocation11 + $0x6c] sm:$0xff]
        %v870 = vld [vmem:[#allocation11 + $0x74] sm:$0xf]
        %v871 = vld [vmem:[#allocation11 + $0x78] sm:$0xff]
        %v872 = vld [vmem:[#allocation11 + $0x80] sm:$0xf]
        %v873 = vld [vmem:[#allocation11 + $0x84] sm:$0xff]
        %v874 = vld [vmem:[#allocation11 + $0x8c] sm:$0xf]
        %v875 = vld [vmem:[#allocation11 + $0x90] sm:$0xff]
        %v876 = vld [vmem:[#allocation11 + $0x98] sm:$0xf]
        %v877 = vld [vmem:[#allocation11 + $0x9c] sm:$0xff]
        %v878 = vld [vmem:[#allocation11 + $0xa4] sm:$0xf]
        %v879 = vld [vmem:[#allocation11 + $0xa8] sm:$0xff]
        %v880 = vld [vmem:[#allocation11 + $0xb0] sm:$0xf]
        %v881 = vld [vmem:[#allocation11 + $0xb4] sm:$0xff]
        %v882 = vld [vmem:[#allocation11 + $0xbc] sm:$0xf]
        %v883 = vld [vmem:[#allocation11 + $0xc0] sm:$0xff]
        %v884 = vld [vmem:[#allocation11 + $0xc8] sm:$0xf]
        %v885 = vld [vmem:[#allocation11 + $0xcc] sm:$0xff]
        %v886 = vld [vmem:[#allocation11 + $0xd4] sm:$0xf]
        %v887 = vld [vmem:[#allocation11 + $0xd8] sm:$0xff]
        %v888 = vld [vmem:[#allocation11 + $0xe0] sm:$0xf]
        %v889 = vld [vmem:[#allocation11 + $0xe4] sm:$0xff]
        %v890 = vld [vmem:[#allocation11 + $0xec] sm:$0xf]
        %v891 = vld [vmem:[#allocation11 + $0xf0] sm:$0xff]
        %v892 = vld [vmem:[#allocation11 + $0xf8] sm:$0xf]
        %v893 = vld [vmem:[#allocation11 + $0xfc] sm:$0xff]
        %v894 = vld [vmem:[#allocation11 + $0x104] sm:$0xf]
        %v895 = vld [vmem:[#allocation11 + $0x108] sm:$0xff]
        %v896 = vld [vmem:[#allocation11 + $0x110] sm:$0xf]
        %v897 = vld [vmem:[#allocation11 + $0x114] sm:$0xff]
        %v898 = vld [vmem:[#allocation11 + $0x11c] sm:$0xf]
        %v899 = vld [vmem:[#allocation11 + $0x120] sm:$0xff]
        %v900 = vld [vmem:[#allocation11 + $0x128] sm:$0xf]
        %v901 = vld [vmem:[#allocation11 + $0x12c] sm:$0xff]
        %v902 = vld [vmem:[#allocation11 + $0x134] sm:$0xf]
        %v903 = vld [vmem:[#allocation11 + $0x138] sm:$0xff]
        %v904 = vld [vmem:[#allocation11 + $0x140] sm:$0xf]
        %v905 = vld [vmem:[#allocation11 + $0x144] sm:$0xff]
        %v906 = vld [vmem:[#allocation11 + $0x14c] sm:$0xf]
        %v907 = vld [vmem:[#allocation11 + $0x150] sm:$0xff]
        %v908 = vld [vmem:[#allocation11 + $0x158] sm:$0xf]
        %v909 = vld [vmem:[#allocation11 + $0x15c] sm:$0xff]
        %v910 = vld [vmem:[#allocation11 + $0x164] sm:$0xf]
        %v911 = vld [vmem:[#allocation11 + $0x168] sm:$0xff]
        %v912 = vld [vmem:[#allocation11 + $0x170] sm:$0xf]
        %v913 = vld [vmem:[#allocation11 + $0x174] sm:$0xff]
        %v914 = vld [vmem:[#allocation11 + $0x17c] sm:$0xf]
        %v915 = vld [vmem:[%s7] sm:$0x7]
        %v917 = vlaneseq
        %v918 = vshrl.u32 %v917, 7
        %v919 = vsub.s32 0, %v918
        %v920 = vrot.slane %v915, %v919
        %v921 = vlaneseq
        %v922 = vshrl.u32 %v921, 7
        %v923 = vsub.s32 1, %v922
        %v924 = vrot.slane %v915, %v923
        %v925 = vlaneseq
        %v926 = vshrl.u32 %v925, 7
        %v927 = vsub.s32 2, %v926
        %v928 = vrot.slane %v915, %v927
        %v996 = vunpack.c.l.b16 %v851
        %v997 = vunpack.c.h.b16 %v851
        %v998 = vunpack.c.l.b16 %v852
        %v999 = vunpack.c.l.b16 %v853
        %v1000 = vunpack.c.h.b16 %v853
        %v1001 = vunpack.c.l.b16 %v854
        %v1002 = vunpack.c.l.b16 %v855
        %v1003 = vunpack.c.h.b16 %v855
        %v1004 = vunpack.c.l.b16 %v856
        %v1005 = vunpack.c.l.b16 %v857
        %v1006 = vunpack.c.h.b16 %v857
        %v1007 = vunpack.c.l.b16 %v858
        %v1008 = vunpack.c.l.b16 %v859
        %v1009 = vunpack.c.h.b16 %v859
        %v1010 = vunpack.c.l.b16 %v860
        %v1011 = vunpack.c.l.b16 %v861
        %v1012 = vunpack.c.h.b16 %v861
        %v1013 = vunpack.c.l.b16 %v862
        %v1014 = vunpack.c.l.b16 %v863
        %v1015 = vunpack.c.h.b16 %v863
        %v1016 = vunpack.c.l.b16 %v864
        %v1017 = vunpack.c.l.b16 %v865
        %v1018 = vunpack.c.h.b16 %v865
        %v1019 = vunpack.c.l.b16 %v866
        %v1020 = vunpack.c.l.b16 %v867
        %v1021 = vunpack.c.h.b16 %v867
        %v1022 = vunpack.c.l.b16 %v868
        %v1023 = vunpack.c.l.b16 %v869
        %v1024 = vunpack.c.h.b16 %v869
        %v1025 = vunpack.c.l.b16 %v870
        %v1026 = vunpack.c.l.b16 %v871
        %v1027 = vunpack.c.h.b16 %v871
        %v1028 = vunpack.c.l.b16 %v872
        %v1029 = vunpack.c.l.b16 %v873
        %v1030 = vunpack.c.h.b16 %v873
        %v1031 = vunpack.c.l.b16 %v874
        %v1032 = vunpack.c.l.b16 %v875
        %v1033 = vunpack.c.h.b16 %v875
        %v1034 = vunpack.c.l.b16 %v876
        %v1035 = vunpack.c.l.b16 %v877
        %v1036 = vunpack.c.h.b16 %v877
        %v1037 = vunpack.c.l.b16 %v878
        %v1038 = vunpack.c.l.b16 %v879
        %v1039 = vunpack.c.h.b16 %v879
        %v1040 = vunpack.c.l.b16 %v880
        %v1041 = vunpack.c.l.b16 %v881
        %v1042 = vunpack.c.h.b16 %v881
        %v1043 = vunpack.c.l.b16 %v882
        %v1044 = vunpack.c.l.b16 %v883
        %v1045 = vunpack.c.h.b16 %v883
        %v1046 = vunpack.c.l.b16 %v884
        %v1047 = vunpack.c.l.b16 %v885
        %v1048 = vunpack.c.h.b16 %v885
        %v1049 = vunpack.c.l.b16 %v886
        %v1050 = vunpack.c.l.b16 %v887
        %v1051 = vunpack.c.h.b16 %v887
        %v1052 = vunpack.c.l.b16 %v888
        %v1053 = vunpack.c.l.b16 %v889
        %v1054 = vunpack.c.h.b16 %v889
        %v1055 = vunpack.c.l.b16 %v890
        %v1056 = vunpack.c.l.b16 %v891
        %v1057 = vunpack.c.h.b16 %v891
        %v1058 = vunpack.c.l.b16 %v892
        %v1059 = vunpack.c.l.b16 %v893
        %v1060 = vunpack.c.h.b16 %v893
        %v1061 = vunpack.c.l.b16 %v894
        %v1062 = vunpack.c.l.b16 %v895
        %v1063 = vunpack.c.h.b16 %v895
        %v1064 = vunpack.c.l.b16 %v896
        %v1065 = vunpack.c.l.b16 %v897
        %v1066 = vunpack.c.h.b16 %v897
        %v1067 = vunpack.c.l.b16 %v898
        %v1068 = vunpack.c.l.b16 %v899
        %v1069 = vunpack.c.h.b16 %v899
        %v1070 = vunpack.c.l.b16 %v900
        %v1071 = vunpack.c.l.b16 %v901
        %v1072 = vunpack.c.h.b16 %v901
        %v1073 = vunpack.c.l.b16 %v902
        %v1074 = vunpack.c.l.b16 %v903
        %v1075 = vunpack.c.h.b16 %v903
        %v1076 = vunpack.c.l.b16 %v904
        %v1077 = vunpack.c.l.b16 %v905
        %v1078 = vunpack.c.h.b16 %v905
        %v1079 = vunpack.c.l.b16 %v906
        %v1080 = vunpack.c.l.b16 %v907
        %v1081 = vunpack.c.h.b16 %v907
        %v1082 = vunpack.c.l.b16 %v908
        %v1083 = vunpack.c.l.b16 %v909
        %v1084 = vunpack.c.h.b16 %v909
        %v1085 = vunpack.c.l.b16 %v910
        %v1086 = vunpack.c.l.b16 %v911
        %v1087 = vunpack.c.h.b16 %v911
        %v1088 = vunpack.c.l.b16 %v912
        %v1089 = vunpack.c.l.b16 %v913
        %v1090 = vunpack.c.h.b16 %v913
        %v1091 = vunpack.c.l.b16 %v914
        %v1092 = vpack.c.b16 %v999, %v996
        %v1093 = vpack.c.b16 %v1000, %v997
        %v1094 = vpack.c.b16 %v1001, %v998
        %v1095 = vpack.c.b16 %v1005, %v1002
        %v1096 = vpack.c.b16 %v1006, %v1003
        %v1097 = vpack.c.b16 %v1007, %v1004
        %v1098 = vpack.c.b16 %v1011, %v1008
        %v1099 = vpack.c.b16 %v1012, %v1009
        %v1100 = vpack.c.b16 %v1013, %v1010
        %v1101 = vpack.c.b16 %v1017, %v1014
        %v1102 = vpack.c.b16 %v1018, %v1015
        %v1103 = vpack.c.b16 %v1019, %v1016
        %v1104 = vpack.c.b16 %v1023, %v1020
        %v1105 = vpack.c.b16 %v1024, %v1021
        %v1106 = vpack.c.b16 %v1025, %v1022
        %v1107 = vpack.c.b16 %v1029, %v1026
        %v1108 = vpack.c.b16 %v1030, %v1027
        %v1109 = vpack.c.b16 %v1031, %v1028
        %v1110 = vpack.c.b16 %v1035, %v1032
        %v1111 = vpack.c.b16 %v1036, %v1033
        %v1112 = vpack.c.b16 %v1037, %v1034
        %v1113 = vpack.c.b16 %v1041, %v1038
        %v1114 = vpack.c.b16 %v1042, %v1039
        %v1115 = vpack.c.b16 %v1043, %v1040
        %v1116 = vpack.c.b16 %v1047, %v1044
        %v1117 = vpack.c.b16 %v1048, %v1045
        %v1118 = vpack.c.b16 %v1049, %v1046
        %v1119 = vpack.c.b16 %v1053, %v1050
        %v1120 = vpack.c.b16 %v1054, %v1051
        %v1121 = vpack.c.b16 %v1055, %v1052
        %v1122 = vpack.c.b16 %v1059, %v1056
        %v1123 = vpack.c.b16 %v1060, %v1057
        %v1124 = vpack.c.b16 %v1061, %v1058
        %v1125 = vpack.c.b16 %v1065, %v1062
        %v1126 = vpack.c.b16 %v1066, %v1063
        %v1127 = vpack.c.b16 %v1067, %v1064
        %v1128 = vpack.c.b16 %v1071, %v1068
        %v1129 = vpack.c.b16 %v1072, %v1069
        %v1130 = vpack.c.b16 %v1073, %v1070
        %v1131 = vpack.c.b16 %v1077, %v1074
        %v1132 = vpack.c.b16 %v1078, %v1075
        %v1133 = vpack.c.b16 %v1079, %v1076
        %v1134 = vpack.c.b16 %v1083, %v1080
        %v1135 = vpack.c.b16 %v1084, %v1081
        %v1136 = vpack.c.b16 %v1085, %v1082
        %v1137 = vpack.c.b16 %v1089, %v1086
        %v1138 = vpack.c.b16 %v1090, %v1087
        %v1139 = vpack.c.b16 %v1091, %v1088
        %1188 = vmatprep.subr.bf16.mxu0 %v1093
        %1189 = vmatpush1.bf16.msra.mxu0 %v1092
        %1190 = vmatprep.subr.bf16.mxu0 %v1096
        %1191 = vmatpush1.bf16.msra.mxu0 %v1095
        %1192 = vmatprep.subr.bf16.mxu0 %v1099
        %1193 = vmatpush1.bf16.msra.mxu0 %v1098
        %1194 = vmatprep.subr.bf16.mxu0 %v1102
        %1195 = vmatpush1.bf16.msra.mxu0 %v1101
        %1196 = vmatprep.subr.bf16.mxu0 %v1105
        %1197 = vmatpush1.bf16.msra.mxu0 %v1104
        %1198 = vmatprep.subr.bf16.mxu0 %v1108
        %1199 = vmatpush1.bf16.msra.mxu0 %v1107
        %1200 = vmatprep.subr.bf16.mxu0 %v1111
        %1201 = vmatpush1.bf16.msra.mxu0 %v1110
        %1202 = vmatprep.subr.bf16.mxu0 %v1114
        %1203 = vmatpush1.bf16.msra.mxu0 %v1113
        %1204 = vmatprep.subr.bf16.mxu0 %v1117
        %1205 = vmatpush1.bf16.msra.mxu0 %v1116
        %1206 = vmatprep.subr.bf16.mxu0 %v1120
        %1207 = vmatpush1.bf16.msra.mxu0 %v1119
        %1208 = vmatprep.subr.bf16.mxu0 %v1123
        %1209 = vmatpush1.bf16.msra.mxu0 %v1122
        %1210 = vmatprep.subr.bf16.mxu0 %v1126
        %1211 = vmatpush1.bf16.msra.mxu0 %v1125
        %1212 = vmatprep.subr.bf16.mxu0 %v1129
        %1213 = vmatpush1.bf16.msra.mxu0 %v1128
        %1214 = vmatprep.subr.bf16.mxu0 %v1132
        %1215 = vmatpush1.bf16.msra.mxu0 %v1131
        %1216 = vmatprep.subr.bf16.mxu0 %v1135
        %1217 = vmatpush1.bf16.msra.mxu0 %v1134
        %1218 = vmatprep.subr.bf16.mxu0 %v1138
        %1219 = vmatpush1.bf16.msra.mxu0 %v1137
        %1220 = vmatprep.mubr.bf16.mxu0 %v850
        %1221 = vmatmul.mubr.bf16.gmra.mrb[0].mxu0 %v849
        %v1222 = vpop.f32.mrb[0].mxu0
        %v1223 = vadd.f32 %v920, %v1222
        %v1224 = vpop.f32.mrb[0].mxu0
        %v1225 = vadd.f32 %v924, %v1224
        %v1226 = vpop.f32.mrb[0].mxu0
        %v1227 = vadd.f32 %v920, %v1226
        %v1228 = vpop.f32.mrb[0].mxu0
        %v1229 = vadd.f32 %v924, %v1228
        %1230 = vdwg.mxu0
        %1231 = vmatprep.subr.bf16.mxu0 0
        %1232 = vmatpush1.bf16.msra.mxu0 %v1094
        %1233 = vmatprep.subr.bf16.mxu0 0
        %1234 = vmatpush1.bf16.msra.mxu0 %v1097
        %1235 = vmatprep.subr.bf16.mxu0 0
        %1236 = vmatpush1.bf16.msra.mxu0 %v1100
        %1237 = vmatprep.subr.bf16.mxu0 0
        %1238 = vmatpush1.bf16.msra.mxu0 %v1103
        %1239 = vmatprep.subr.bf16.mxu0 0
        %1240 = vmatpush1.bf16.msra.mxu0 %v1106
        %1241 = vmatprep.subr.bf16.mxu0 0
        %1242 = vmatpush1.bf16.msra.mxu0 %v1109
        %1243 = vmatprep.subr.bf16.mxu0 0
        %1244 = vmatpush1.bf16.msra.mxu0 %v1112
        %1245 = vmatprep.subr.bf16.mxu0 0
        %1246 = vmatpush1.bf16.msra.mxu0 %v1115
        %1247 = vmatprep.subr.bf16.mxu0 0
        %1248 = vmatpush1.bf16.msra.mxu0 %v1118
        %1249 = vmatprep.subr.bf16.mxu0 0
        %1250 = vmatpush1.bf16.msra.mxu0 %v1121
        %1251 = vmatprep.subr.bf16.mxu0 0
        %1252 = vmatpush1.bf16.msra.mxu0 %v1124
        %1253 = vmatprep.subr.bf16.mxu0 0
        %1254 = vmatpush1.bf16.msra.mxu0 %v1127
        %1255 = vmatprep.subr.bf16.mxu0 0
        %1256 = vmatpush1.bf16.msra.mxu0 %v1130
        %1257 = vmatprep.subr.bf16.mxu0 0
        %1258 = vmatpush1.bf16.msra.mxu0 %v1133
        %1259 = vmatprep.subr.bf16.mxu0 0
        %1260 = vmatpush1.bf16.msra.mxu0 %v1136
        %1261 = vmatprep.subr.bf16.mxu0 0
        %1262 = vmatpush1.bf16.msra.mxu0 %v1139
        %1263 = vmatprep.mubr.bf16.mxu0 %v850
        %1264 = vmatmul.mubr.bf16.gmra.mrb[0].mxu0 %v849
        %v1265 = vpop.f32.mrb[0].mxu0
        %v1266 = vadd.f32 %v928, %v1265
        %v1267 = vpop.f32.mrb[0].mxu0
        %v1268 = vpop.f32.mrb[0].mxu0
        %v1269 = vadd.f32 %v928, %v1268
        %v1270 = vpop.f32.mrb[0].mxu0
        %1271 = vdwg.mxu0
        %v1272 = vxor.u32 %v1223, 2147483648
        %v1273 = vxor.u32 %v1227, 2147483648
        %v1274 = vmul.f32 %v1272, 1.442695
        %v1275 = vpow.pop %v1274
        %v1276 = vmul.f32 %v1273, 1.442695
        %v1277 = vpow.pop %v1276
        %v1278 = vadd.f32 %v1275, 1.0
        %v1279 = vadd.f32 %v1277, 1.0
        %v1280 = vrcp.pop %v1278
        %v1281 = vmul.f32 1.0, %v1280
        %v1282 = vrcp.pop %v1279
        %v1283 = vmul.f32 1.0, %v1282
        %v1284 = vxor.u32 %v1225, 2147483648
        %v1285 = vxor.u32 %v1229, 2147483648
        %v1286 = vmul.f32 %v1284, 1.442695
        %v1287 = vpow.pop %v1286
        %v1288 = vmul.f32 %v1285, 1.442695
        %v1289 = vpow.pop %v1288
        %v1290 = vadd.f32 %v1287, 1.0
        %v1291 = vadd.f32 %v1289, 1.0
        %v1292 = vrcp.pop %v1290
        %v1293 = vmul.f32 1.0, %v1292
        %v1294 = vrcp.pop %v1291
        %v1295 = vmul.f32 1.0, %v1294
        %v1296 = vld [vmem:[%s8] sm:$0x1]
        %v1298 = vlaneseq
        %v1299 = vshrl.u32 %v1298, 7
        %v1300 = vsub.s32 0, %v1299
        %v1301 = vrot.slane %v1296, %v1300
        %v1303 = vmul.f32 %v1281, %v1301
        %v1304 = vmul.f32 %v1283, %v1301
        %v1305 = vadd.f32 %v1266, %v1303
        %v1306 = vadd.f32 %v1269, %v1304
        %v1307 = vtanh.pop %v1305
        %v1308 = vtanh.pop %v1306
        %v1309 = vsub.f32 1.0, %v1293
        %v1310 = vsub.f32 1.0, %v1295
        %v1311 = vmul.f32 %v1309, %v1307
        %v1312 = vmul.f32 %v1310, %v1308
        %1313 = vst [vmem:[%s433] sm:$0xff] %v1311
        %1314 = vst [vmem:[%s433 + $0x8] sm:$0xff] %v1312
        %p1315 = scmp.lt.s32.totalorder %s30, 0
        %s1316 = ssub.s32 0, %s30
        %s1317 = scalar_select %p1315, %s1316, %s30
        %s1318 = sdiv.u32.pop %s1317, 3
        %s1319 = srem.u32.pop %s1317, 3
        %s1320 = ssub.s32 0, %s1319
        %s1321 = scalar_select %p1315, %s1320, %s1319
        %p1322 = scmp.ne.s32.totalorder %s1321, 0
        %p1323 = scmp.lt.s32.totalorder %s1321, 0
        %p1324 = pnand %p1323, %p1322
        %p1325 = pneg %p1324
        %s1326 = sadd.s32 %s1321, 3
        %s1327 = scalar_select %p1325, %s1326, %s1321
        %p1328 = scmp.eq.s32.totalorder %s1327, 0
        // Predicated region
        $region81: #{tpu_custom_call.1} parent=55 // pred_check
          %p1329 = pneg %p1328
        $region82: #{tpu_custom_call.1} parent=55 // pred_check_branch
          %1331 = sbr.rel (%p1329) target = $region84
        $region83: #{tpu_custom_call.1} parent=55 // pred_region
          %1332 = vst [vmem:[#allocation2] sm:$0xff] %v1311
          %1333 = vst [vmem:[#allocation2 + $0x8] sm:$0xff] %v1312
        $region84: #{tpu_custom_call.1} parent=55 // pred_fallthru
          _
        %p1334 = scmp.eq.s32.totalorder %s1327, 1
        // Predicated region
        $region85: #{tpu_custom_call.1} parent=55 // pred_check
          %p1335 = pneg %p1334
        $region86: #{tpu_custom_call.1} parent=55 // pred_check_branch
          %1337 = sbr.rel (%p1335) target = $region88
        $region87: #{tpu_custom_call.1} parent=55 // pred_region
          %1338 = vst [vmem:[%s833] sm:$0xff] %v1311
          %1339 = vst [vmem:[%s833 + $0x8] sm:$0xff] %v1312
        $region88: #{tpu_custom_call.1} parent=55 // pred_fallthru
          _
        %p1340 = scmp.eq.s32.totalorder %s1327, 2
        // Predicated region
        $region89: #{tpu_custom_call.1} parent=55 // pred_check
          %p1341 = pneg %p1340
        $region90: #{tpu_custom_call.1} parent=55 // pred_check_branch
          %1343 = sbr.rel (%p1341) target = $region92
        $region91: #{tpu_custom_call.1} parent=55 // pred_region
          %1344 = vst [vmem:[%s842] sm:$0xff] %v1311
          %1345 = vst [vmem:[%s842 + $0x8] sm:$0xff] %v1312
        $region92: #{tpu_custom_call.1} parent=55 // pred_fallthru
          _
        %s1346 = sand.u32 %s237, 1
        %s1347 = scalar_lea.sflag [#allocation5], %s1346
        %s1348 = sand.u32 %s237, 1
        %s1349 = smul.addr %s1348, 16
        %s1350 = scalar_lea.vmem [#allocation12], %s1349
        // Predicated region
        $region93: #{tpu_custom_call.1} parent=55 // pred_check
          %p1351 = pneg %p247
        $region94: #{tpu_custom_call.1} parent=55 // pred_check_branch
          %1353 = sbr.rel (%p1351) target = $region96
        $region95: #{tpu_custom_call.1} parent=55 // pred_region
          %s1355 = ssub.s32 256, 256
          %1356 = vsyncadd %s1347, %s1355
          %s1357 = smul.addr %s30, 2
          %s1358 = smul.addr %s1357, 128
          %s1359 = scalar_lea.hbm %s9, %s1358
          %s1360 = sshll.u32 %s1350, 4
          %s1361 = int_to_ptr.vmem [resolvable:$true] %s1360
          %1366 = dma.vmem_to_hbm [thread:$0]  %s1361, 256, %s1359, %s1347, 128, 128, 8
        $region96: #{tpu_custom_call.1} parent=55 // pred_fallthru
          _
      $region56: #{tpu_custom_call.1} parent=5 // pred_fallthru
        _
      %p1367 = scmp.le.s32.totalorder 2, %s25
      // Predicated region
      $region97: #{tpu_custom_call.1} parent=5 // pred_check
        %p1368 = pneg %p1367
      $region98: #{tpu_custom_call.1} parent=5 // pred_check_branch
        %1370 = sbr.rel (%p1368) target = $region100
      $region99: #{tpu_custom_call.1} parent=5 // pred_region
        %s1371 = ssub.s32 %s25, 2
        // Predicated region
        $region101: #{tpu_custom_call.1} parent=99 // pred_check
          %p1372 = pneg %p253
        $region102: #{tpu_custom_call.1} parent=99 // pred_check_branch
          %1374 = sbr.rel (%p1372) target = $region104
        $region103: #{tpu_custom_call.1} parent=99 // pred_region
          %s1375 = sand.u32 %s238, 1
          %s1376 = scalar_lea.sflag [#allocation5], %s1375
          %s1377 = sand.u32 %s238, 1
          %s1378 = smul.addr %s1377, 16
          %s1379 = scalar_lea.vmem [#allocation12], %s1378
          %1380 = dma.done %s1376, 256
        $region104: #{tpu_custom_call.1} parent=99 // pred_fallthru
          _
      $region100: #{tpu_custom_call.1} parent=5 // pred_fallthru
        _
    $region6: #{tpu_custom_call.1} parent=1 // loop_footer
      %s29 = sadd.s32 1, %s25
    $region7: #{tpu_custom_call.1} parent=1 // loop_footer_branch
      %24 = sbr.rel target = $region3
    $region8: #{tpu_custom_call.1} parent=1 // loop_exit
      _
    %1381 = vsyncpa [#allocation4], 1
    %s1382 = scalar_lea.sflag [#allocation4], 1
    %1383 = vsyncpa %s1382, 1
    %1384 = vsyncpa [#allocation7], 1
    %s1385 = scalar_lea.sflag [#allocation7], 1
    %1386 = vsyncpa %s1385, 1
    %1387 = vsyncpa [#allocation10], 1
    %1388 = vsyncpa [#allocation5], 1
    %s1389 = scalar_lea.sflag [#allocation5], 1
    %1390 = vsyncpa %s1389, 1

</llo_original>
